<compile_context>
chip_gen: v5e
topology: v5e:2x2
jax: 0.10.0
libtpu: 0.0.40
codegen_flags: <defaults>
</compile_context>

<pallas_src>
import functools

import jax
import jax.numpy as jnp
from jax import lax
from jax.experimental import pallas as pl
from jax.experimental.pallas import tpu as pltpu


def _round_up(x, m):
    return (x + m - 1) // m * m


def _fused_convT_norm_act_kernel(x_ref, w_ref, p_ref, o_ref, *,
                                 k, w_pad, w_out, h_out, block_n,
                                 norm, activation):
    """One grid step = `block_n` batch elements.

    x_ref : (block_n, C_in, L_in)   dilated + edge-padded input, flattened
    w_ref : (C_out, k*k*C_in)       flipped ConvTranspose2d taps, tap-major
    p_ref : (P, C_out, 1) f32       packed params [bias, act_w, (alpha,gamma,beta)]
    o_ref : (block_n, C_out, L_out) lane-dense output; columns outside the
                                    (H_out, W_out) window are scratch.
    """
    c_out = o_ref.shape[1]
    l_out = o_ref.shape[2]
    l_valid = h_out * w_pad
    eps = jnp.float32(1e-5)
    inv_cnt = jnp.float32(1.0 / (h_out * w_out))

    # Static mask of valid output columns (row-major (H_out, W_pad) flat),
    # hoisted (incl. its broadcast) out of the batch loop.
    cols = lax.broadcasted_iota(jnp.int32, (1, l_out), 1)
    valid = jnp.logical_and((cols % w_pad) < w_out, cols < l_valid)
    validb = jnp.broadcast_to(valid, (c_out, l_out))

    # Per-channel parameters: one packed VMEM tile, read once per grid step.
    bias = p_ref[0].astype(jnp.float32)        # (C_out, 1) conv bias
    act_w = p_ref[1].astype(jnp.float32)       # (C_out, 1) PReLU slope
    if norm == "instancenorm2dplus":
        in_alpha = p_ref[2].astype(jnp.float32)
        in_gamma = p_ref[3].astype(jnp.float32)
        in_beta = p_ref[4].astype(jnp.float32)

    w_mat = w_ref[...]                         # (C_out, k*k*C_in), hoisted
    prec = (lax.Precision.HIGHEST if w_mat.dtype == jnp.float32
            else lax.Precision.DEFAULT)

    def body(n, carry):
        # ---- transposed conv: stack the k*k lane-shifted taps and hit the
        # MXU once with a (C_out, k*k*C_in) x (k*k*C_in, L_out) matmul. -------
        # (Concatenate on plain 32-bit sublane layout for robustness, then one
        #  cast to the MXU compute dtype.)
        taps = [x_ref[n, :, pl.ds(kh * w_pad + kw, l_out)].astype(jnp.float32)
                for kh in range(k) for kw in range(k)]
        xstk = jnp.concatenate(taps, axis=0).astype(w_mat.dtype)
        acc = jnp.dot(w_mat, xstk, preferred_element_type=jnp.float32,
                      precision=prec)                        # (C_out, L_out)

        # ---- fused norm: masked TWO-PASS stats -> per-channel scale/shift --
        if norm is None:
            scale = jnp.ones_like(bias)
            shift = bias
        else:
            acc_m = jnp.where(validb, acc, 0.0)
            mean_nb = jnp.sum(acc_m, axis=-1, keepdims=True) * inv_cnt
            diff = jnp.where(validb, acc - mean_nb, 0.0)     # centered, masked
            var = jnp.sum(diff * diff, axis=-1, keepdims=True) * inv_cnt
            inv = lax.rsqrt(var + eps)
            if norm == "instancenorm2d":
                # (acc + b - (mean_nb + b)) * inv  -> conv bias cancels
                scale = inv
                shift = -mean_nb * inv
            else:  # instancenorm2dplus — conv bias does shift the channel means
                mean_c = mean_nb + bias
                m = jnp.mean(mean_c, axis=0, keepdims=True)
                v = jnp.sum((mean_c - m) ** 2, axis=0, keepdims=True) \
                    / jnp.float32(c_out - 1)
                means_norm = (mean_c - m) * lax.rsqrt(v + eps)
                scale = in_gamma * inv
                shift = in_gamma * (means_norm * in_alpha - mean_nb * inv) + in_beta

        y = acc * scale + shift                 # single fused affine pass

        # ---- activation ----------------------------------------------------
        if activation == "prelu":
            y = jnp.where(y >= 0, y, act_w * y)
        elif activation == "relu":
            y = jnp.maximum(y, 0.0)
        elif activation == "leaky":
            y = jnp.where(y >= 0, y, jnp.float32(0.01) * y)
        elif activation == "elu":
            y = jnp.where(y > 0, y, jnp.expm1(y))
        elif activation == "swish":
            y = y * jax.nn.sigmoid(y)
        # None -> identity

        o_ref[n] = y.astype(o_ref.dtype)
        return carry

    lax.fori_loop(0, block_n, body, 0, unroll=block_n <= 4)


def conv_transpose_layer_2d(x, weight, bias, prelu_w, *, stride,
                            norm="instancenorm2d", activation="prelu",
                            alpha=None, gamma=None, beta=None,
                            block_n=None, compute_dtype=jnp.bfloat16):
    """Forward of ConvTransposeLayer2D.

    x: (N, C_in, H, W); weight: (C_in, C_out, k, k) (PyTorch ConvTranspose2d
    layout); bias / prelu_w (and alpha/gamma/beta for 'instancenorm2dplus'):
    (C_out,).  padding = k // 2, padding_mode='zeros' (module defaults).
    """
    norm = None if norm is None else norm.lower()
    activation = None if activation is None else activation.lower()
    if norm not in (None, "instancenorm2d", "instancenorm2dplus"):
        raise NotImplementedError(f"norm={norm}")
    if activation not in (None, "prelu", "relu", "leaky", "elu", "swish"):
        raise NotImplementedError(f"activation={activation}")

    N, C_in, H, W = x.shape
    wc_in, C_out, kH, kW = weight.shape
    assert wc_in == C_in and kH == kW
    if norm == "instancenorm2dplus" and C_out < 2:
        raise NotImplementedError("InstanceNorm2dPlus needs >= 2 channels")
    k, s = kH, stride
    p = k // 2
    H_out = (H - 1) * s - 2 * p + k
    W_out = (W - 1) * s - 2 * p + k
    H_pad, W_pad = H_out + k - 1, W_out + k - 1   # dilated + edge-padded extent
    edge = k - 1 - p
    out_dtype = x.dtype
    cdt = jnp.dtype(compute_dtype)

    # ConvTranspose == correlation of the stride-dilated, edge-padded input
    # with the flipped kernel.  Cast to the compute dtype BEFORE padding so
    # the dilated tensor and its DMA are half-width for bf16.
    x_c = x.astype(cdt)
    zero = jnp.array(0, cdt)
    x_up = lax.pad(x_c, zero, ((0, 0, 0), (0, 0, 0),
                               (edge, edge, s - 1), (edge, edge, s - 1)))

    # Lane-dense flattened layout: every (kh, kw) tap is one contiguous lane
    # slice; output rounded to a multiple of 128 lanes (unmasked stores).
    L_valid = H_out * W_pad
    L_out = _round_up(L_valid, 128)
    d_max = (k - 1) * (W_pad + 1)                 # largest static tap offset
    L_body = H_pad * W_pad
    L_in = _round_up(d_max + L_out, 128)
    x_flat = x_up.reshape(N, C_in, L_body)
    x_flat = jnp.pad(x_flat, ((0, 0), (0, 0), (0, L_in - L_body)))

    # Flipped taps stacked tap-major along the contraction dim:
    #   w_mat[o, t*C_in + i] = weight[i, o, k-1-kh, k-1-kw],  t = kh*k + kw.
    wf = jnp.flip(weight, axis=(2, 3)).transpose(2, 3, 1, 0)   # (k,k,C_out,C_in)
    w_mat = wf.reshape(k * k, C_out, C_in).transpose(1, 0, 2)
    w_mat = w_mat.reshape(C_out, k * k * C_in).astype(cdt)

    # Pack all per-channel vectors into ONE input (one DMA / one VMEM slot).
    prelu_w = jnp.broadcast_to(jnp.asarray(prelu_w, jnp.float32), (C_out,))
    bias = jnp.asarray(bias, jnp.float32)
    if norm == "instancenorm2dplus":
        assert alpha is not None and gamma is not None and beta is not None
        params = jnp.stack([bias, prelu_w,
                            jnp.asarray(alpha, jnp.float32),
                            jnp.asarray(gamma, jnp.float32),
                            jnp.asarray(beta, jnp.float32)])
    else:
        params = jnp.stack([bias, prelu_w])
    params = params.reshape(params.shape[0], C_out, 1)
    P = params.shape[0]

    # ---- per-generation VMEM budget & batch-fusion factor -------------------
    try:
        info = pltpu.get_tpu_info()
        vmem_cap = int(getattr(info, "vmem_capacity_bytes", 0)) or (64 << 20)
    except Exception:
        vmem_cap = 64 << 20                        # conservative (v7x-sized)
    vmem_budget = int(0.75 * vmem_cap)             # ~48 MiB v7x, ~96 MiB v5e/v6e

    in_bytes = C_in * L_in * cdt.itemsize
    out_bytes = C_out * L_out * jnp.dtype(out_dtype).itemsize
    if block_n is None:
        block_n = 1
        for bn in range(1, N + 1):
            if N % bn:
                continue
            if N >= 2 and N // bn < 2:             # keep grid >= 2 (megacore)
                continue
            if 4 * bn * (in_bytes + out_bytes) > vmem_budget // 2:
                continue                           # leave room for scratch
            block_n = bn
            if bn * (in_bytes + out_bytes) >= (512 << 10):
                break                              # big enough to amortize
    assert N % block_n == 0, "block_n must divide the batch"

    blk_bytes = block_n * (in_bytes + out_bytes)
    const_bytes = (w_mat.size + params.size) * 4
    vmem_limit = int(min(max(4 * blk_bytes + 4 * const_bytes + (4 << 20),
                             32 << 20), vmem_budget))

    kernel = functools.partial(
        _fused_convT_norm_act_kernel, k=k, w_pad=W_pad, w_out=W_out,
        h_out=H_out, block_n=block_n, norm=norm, activation=activation)

    out = pl.pallas_call(
        kernel,
        out_shape=jax.ShapeDtypeStruct((N, C_out, L_out), out_dtype),
        grid_spec=pltpu.PrefetchScalarGridSpec(
            num_scalar_prefetch=0,
            grid=(N // block_n,),
            in_specs=[
                pl.BlockSpec((block_n, C_in, L_in), lambda n: (n, 0, 0)),
                pl.BlockSpec((C_out, k * k * C_in), lambda n: (0, 0)),
                pl.BlockSpec((P, C_out, 1), lambda n: (0, 0, 0)),
            ],
            out_specs=pl.BlockSpec((block_n, C_out, L_out),
                                   lambda n: (n, 0, 0)),
        ),
        compiler_params=pltpu.CompilerParams(
            dimension_semantics=("parallel",),     # batch axis -> both v7x TCs
            vmem_limit_bytes=vmem_limit,
        ),
    )(x_flat, w_mat, params)

    # Trim per-row scratch columns and restore NCHW (cheap XLA slice).
    out = out[:, :, :L_valid].reshape(N, C_out, H_out, W_pad)[:, :, :, :W_out]
    return out


def _reference(x, weight, bias, prelu_w, *, stride, norm, activation,
               alpha=None, gamma=None, beta=None):
    """Pure-JAX reference mirroring the PyTorch module (scatter-form convT)."""
    N, C_in, H, W = x.shape
    _, C_out, k, _ = weight.shape
    s, p = stride, k // 2
    H_out = (H - 1) * s - 2 * p + k
    W_out = (W - 1) * s - 2 * p + k
    Hf, Wf = (H - 1) * s + k, (W - 1) * s + k
    y = jnp.zeros((N, C_out, Hf, Wf), jnp.float32)
    for kh in range(k):
        for kw in range(k):
            contrib = jnp.einsum("nihw,io->nohw", x, weight[:, :, kh, kw],
                                 precision=lax.Precision.HIGHEST)
            y = y.at[:, :, kh:kh + (H - 1) * s + 1:s,
                     kw:kw + (W - 1) * s + 1:s].add(contrib)
    y = y[:, :, p:p + H_out, p:p + W_out] + bias[None, :, None, None]
    eps = 1e-5
    if norm == "instancenorm2d":
        mu = jnp.mean(y, axis=(2, 3), keepdims=True)
        var = jnp.var(y, axis=(2, 3), keepdims=True)
        y = (y - mu) / jnp.sqrt(var + eps)
    elif norm == "instancenorm2dplus":
        means = jnp.mean(y, axis=(2, 3))
        m = jnp.mean(means, axis=-1, keepdims=True)
        v = jnp.var(means, axis=-1, keepdims=True, ddof=1)
        means_n = (means - m) / jnp.sqrt(v + eps)
        mu = jnp.mean(y, axis=(2, 3), keepdims=True)
        var = jnp.var(y, axis=(2, 3), keepdims=True)
        h = (y - mu) / jnp.sqrt(var + eps)
        h = h + means_n[..., None, None] * alpha[None, :, None, None]
        y = gamma[None, :, None, None] * h + beta[None, :, None, None]
    if activation == "prelu":
        y = jnp.where(y >= 0, y, prelu_w[None, :, None, None] * y)
    elif activation == "relu":
        y = jnp.maximum(y, 0.0)
    return y


if __name__ == "__main__":
    key = jax.random.PRNGKey(0)
    kx, kw_, kb, ka, kg = jax.random.split(key, 5)

    # ConvTransposeLayer2D(in_features=4, out_features=8, kernel=3, stride=2)
    N, C_in, H, W = 2, 4, 16, 16
    C_out, k, s = 8, 3, 2
    x = jax.random.normal(kx, (N, C_in, H, W), dtype=jnp.float32)
    weight = 0.1 * jax.random.normal(kw_, (C_in, C_out, k, k), dtype=jnp.float32)
    bias = 0.1 * jax.random.normal(kb, (C_out,), dtype=jnp.float32)
    prelu_w = 0.25 * jnp.ones((C_out,), jnp.float32)   # PReLU default init
    alpha = 1.0 + 0.02 * jax.random.normal(ka, (C_out,), dtype=jnp.float32)
    gamma = 1.0 + 0.02 * jax.random.normal(kg, (C_out,), dtype=jnp.float32)
    beta = jnp.zeros((C_out,), jnp.float32)

    # A1: module defaults, f32 compute path (tight check vs. the reference).
    out_a32 = conv_transpose_layer_2d(x, weight, bias, prelu_w, stride=s,
                                      norm="instancenorm2d", activation="prelu",
                                      compute_dtype=jnp.float32)
    out_a32 = jax.block_until_ready(out_a32)
    ref_a = _reference(x, weight, bias, prelu_w, stride=s,
                       norm="instancenorm2d", activation="prelu")
    assert out_a32.shape == (N, C_out, 31, 31)
    assert jnp.allclose(out_a32, ref_a, atol=5e-4, rtol=5e-4), "f32 path mismatch"

    # A2: default bf16 MXU path (operands in bf16, f32 accumulation).
    out_a16 = conv_transpose_layer_2d(x, weight, bias, prelu_w, stride=s,
                                      norm="instancenorm2d", activation="prelu")
    out_a16 = jax.block_until_ready(out_a16)
    assert jnp.allclose(out_a16, ref_a, atol=3e-2, rtol=3e-2), "bf16 path mismatch"

    # B: norm='InstanceNorm2dPlus', f32 compute path (tight check).
    out_b = conv_transpose_layer_2d(x, weight, bias, prelu_w, stride=s,
                                    norm="instancenorm2dplus", activation="prelu",
                                    alpha=alpha, gamma=gamma, beta=beta,
                                    compute_dtype=jnp.float32)
    out_b = jax.block_until_ready(out_b)
    ref_b = _reference(x, weight, bias, prelu_w, stride=s,
                       norm="instancenorm2dplus", activation="prelu",
                       alpha=alpha, gamma=gamma, beta=beta)
    assert jnp.allclose(out_b, ref_b, atol=5e-4, rtol=5e-4), "instancenorm2dplus mismatch"

    print("KERNEL_OK")
</pallas_src>

<mosaic_0001>
module attributes {stable_mosaic.version = 11 : i64} {
  func.func @_fused_convT_norm_act_kernel(%arg0: i32, %arg1: memref<1x4x1152xf32, #tpu.memory_space<vmem>>, %arg2: memref<8x36xf32, #tpu.memory_space<vmem>>, %arg3: memref<2x8x1xf32, #tpu.memory_space<vmem>>, %arg4: memref<1x8x1024xf32, #tpu.memory_space<vmem>>) attributes {dimension_semantics = [#tpu.dimension_semantics<parallel>], iteration_bounds = array<i64: 2>, scalar_prefetch = 0 : i64, scratch_operands = 0 : i64, tpu.core_type = #tpu.core_type<tc>, window_params = [{transform_indices = @transform_0, window_bounds = array<i64: 1, 4, 1152>}, {pipeline_mode = #tpu.pipeline_mode<synchronous>, transform_indices = @transform_1, window_bounds = array<i64: 8, 36>}, {pipeline_mode = #tpu.pipeline_mode<synchronous>, transform_indices = @transform_2, window_bounds = array<i64: 2, 8, 1>}, {transform_indices = @transform_3, window_bounds = array<i64: 1, 8, 1024>}]} {
    %0 = tpu.iota {dimensions = array<i32: 1>} : vector<1x1024xi32>
    %c33_i32 = arith.constant 33 : i32
    %c0_i32 = arith.constant 0 : i32
    %1 = arith.cmpi eq, %c33_i32, %c0_i32 : i32
    %c1_i32 = arith.constant 1 : i32
    %2 = arith.select %1, %c1_i32, %c33_i32 : i32
    %3 = vector.broadcast %2 : i32 to vector<1x1024xi32>
    %4 = arith.remsi %0, %3 : vector<1x1024xi32>
    %c0_i32_0 = arith.constant 0 : i32
    %5 = vector.broadcast %c0_i32_0 : i32 to vector<1x1024xi32>
    %6 = arith.cmpi ne, %4, %5 : vector<1x1024xi32>
    %c0_i32_1 = arith.constant 0 : i32
    %7 = vector.broadcast %c0_i32_1 : i32 to vector<1x1024xi32>
    %8 = arith.cmpi slt, %4, %7 : vector<1x1024xi32>
    %c0_i32_2 = arith.constant 0 : i32
    %9 = arith.cmpi slt, %2, %c0_i32_2 : i32
    %10 = vector.broadcast %9 : i1 to vector<1x1024xi1>
    %11 = vector.broadcast %10 : vector<1x1024xi1> to vector<1x1024xi1>
    %12 = arith.xori %8, %11 : vector<1x1024xi1>
    %13 = arith.andi %12, %6 : vector<1x1024xi1>
    %14 = vector.broadcast %2 : i32 to vector<1x1024xi32>
    %15 = arith.addi %4, %14 : vector<1x1024xi32>
    %16 = arith.select %13, %15, %4 : vector<1x1024xi1>, vector<1x1024xi32>
    %c31_i32 = arith.constant 31 : i32
    %17 = vector.broadcast %c31_i32 : i32 to vector<1x1024xi32>
    %18 = arith.cmpi slt, %16, %17 : vector<1x1024xi32>
    %c1023_i32 = arith.constant 1023 : i32
    %19 = vector.broadcast %c1023_i32 : i32 to vector<1x1024xi32>
    %20 = arith.cmpi slt, %0, %19 : vector<1x1024xi32>
    %21 = arith.andi %18, %20 : vector<1x1024xi1>
    %22 = vector.shape_cast %21 : vector<1x1024xi1> to vector<1x1024xi1>
    %23 = vector.broadcast %22 : vector<1x1024xi1> to vector<8x1024xi1>
    %c1 = arith.constant 1 : index
    %c0 = arith.constant 0 : index
    %c0_3 = arith.constant 0 : index
    %24 = vector.load %arg3[%c1, %c0, %c0_3] : memref<2x8x1xf32, #tpu.memory_space<vmem>>, vector<1x8x1xf32>
    %25 = vector.shape_cast %24 : vector<1x8x1xf32> to vector<8x1xf32>
    %c0_4 = arith.constant 0 : index
    %c0_5 = arith.constant 0 : index
    %26 = vector.load %arg2[%c0_4, %c0_5] : memref<8x36xf32, #tpu.memory_space<vmem>>, vector<8x36xf32>
    %cst = arith.constant 0.00104058278 : f32
    %cst_6 = arith.constant 9.99999974E-6 : f32
    %c0_i32_7 = arith.constant 0 : i32
    %27 = arith.index_cast %c0_i32_7 : i32 to index
    %c0_8 = arith.constant 0 : index
    %c0_9 = arith.constant 0 : index
    %28 = vector.load %arg1[%27, %c0_8, %c0_9] : memref<1x4x1152xf32, #tpu.memory_space<vmem>>, vector<1x4x1024xf32>
    %29 = vector.shape_cast %28 : vector<1x4x1024xf32> to vector<4x1024xf32>
    %30 = arith.index_cast %c0_i32_7 : i32 to index
    %c0_10 = arith.constant 0 : index
    %c1_11 = arith.constant 1 : index
    %31 = vector.load %arg1[%30, %c0_10, %c1_11] : memref<1x4x1152xf32, #tpu.memory_space<vmem>>, vector<1x4x1024xf32>
    %32 = vector.shape_cast %31 : vector<1x4x1024xf32> to vector<4x1024xf32>
    %33 = arith.index_cast %c0_i32_7 : i32 to index
    %c0_12 = arith.constant 0 : index
    %c2 = arith.constant 2 : index
    %34 = vector.load %arg1[%33, %c0_12, %c2] : memref<1x4x1152xf32, #tpu.memory_space<vmem>>, vector<1x4x1024xf32>
    %35 = vector.shape_cast %34 : vector<1x4x1024xf32> to vector<4x1024xf32>
    %36 = arith.index_cast %c0_i32_7 : i32 to index
    %c0_13 = arith.constant 0 : index
    %c33 = arith.constant 33 : index
    %37 = vector.load %arg1[%36, %c0_13, %c33] : memref<1x4x1152xf32, #tpu.memory_space<vmem>>, vector<1x4x1024xf32>
    %38 = vector.shape_cast %37 : vector<1x4x1024xf32> to vector<4x1024xf32>
    %39 = arith.index_cast %c0_i32_7 : i32 to index
    %c0_14 = arith.constant 0 : index
    %c34 = arith.constant 34 : index
    %40 = vector.load %arg1[%39, %c0_14, %c34] : memref<1x4x1152xf32, #tpu.memory_space<vmem>>, vector<1x4x1024xf32>
    %41 = vector.shape_cast %40 : vector<1x4x1024xf32> to vector<4x1024xf32>
    %42 = arith.index_cast %c0_i32_7 : i32 to index
    %c0_15 = arith.constant 0 : index
    %c35 = arith.constant 35 : index
    %43 = vector.load %arg1[%42, %c0_15, %c35] : memref<1x4x1152xf32, #tpu.memory_space<vmem>>, vector<1x4x1024xf32>
    %44 = vector.shape_cast %43 : vector<1x4x1024xf32> to vector<4x1024xf32>
    %45 = arith.index_cast %c0_i32_7 : i32 to index
    %c0_16 = arith.constant 0 : index
    %c66 = arith.constant 66 : index
    %46 = vector.load %arg1[%45, %c0_16, %c66] : memref<1x4x1152xf32, #tpu.memory_space<vmem>>, vector<1x4x1024xf32>
    %47 = vector.shape_cast %46 : vector<1x4x1024xf32> to vector<4x1024xf32>
    %48 = arith.index_cast %c0_i32_7 : i32 to index
    %c0_17 = arith.constant 0 : index
    %c67 = arith.constant 67 : index
    %49 = vector.load %arg1[%48, %c0_17, %c67] : memref<1x4x1152xf32, #tpu.memory_space<vmem>>, vector<1x4x1024xf32>
    %50 = vector.shape_cast %49 : vector<1x4x1024xf32> to vector<4x1024xf32>
    %51 = arith.index_cast %c0_i32_7 : i32 to index
    %c0_18 = arith.constant 0 : index
    %c68 = arith.constant 68 : index
    %52 = vector.load %arg1[%51, %c0_18, %c68] : memref<1x4x1152xf32, #tpu.memory_space<vmem>>, vector<1x4x1024xf32>
    %53 = vector.shape_cast %52 : vector<1x4x1024xf32> to vector<4x1024xf32>
    %54 = tpu.concatenate %29, %32, %35, %38, %41, %44, %47, %50, %53 in 0 : vector<4x1024xf32>, vector<4x1024xf32>, vector<4x1024xf32>, vector<4x1024xf32>, vector<4x1024xf32>, vector<4x1024xf32>, vector<4x1024xf32>, vector<4x1024xf32>, vector<4x1024xf32> -> vector<36x1024xf32>
    %cst_19 = arith.constant dense<0.000000e+00> : vector<8x1024xf32>
    %55 = tpu.matmul %26, %54, %cst_19 {dimension_numbers = #tpu.dot_dimension_numbers<[1], [0], [0], [1], [0, 0, 1, 1], [], []>, precision = #tpu.contract_precision<fp32>} : vector<8x36xf32>, vector<36x1024xf32>, vector<8x1024xf32> -> vector<8x1024xf32>
    %cst_20 = arith.constant 0.000000e+00 : f32
    %56 = vector.broadcast %cst_20 : f32 to vector<8x1024xf32>
    %57 = arith.select %23, %55, %56 : vector<8x1024xi1>, vector<8x1024xf32>
    %cst_21 = arith.constant dense<0.000000e+00> : vector<8xf32>
    %58 = vector.multi_reduction <add>, %57, %cst_21 [1] : vector<8x1024xf32> to vector<8xf32>
    %59 = vector.shape_cast %58 : vector<8xf32> to vector<8x1xf32>
    %60 = vector.broadcast %cst : f32 to vector<8x1xf32>
    %61 = arith.mulf %59, %60 : vector<8x1xf32>
    %62 = vector.broadcast %61 : vector<8x1xf32> to vector<8x1024xf32>
    %63 = arith.subf %55, %62 : vector<8x1024xf32>
    %cst_22 = arith.constant 0.000000e+00 : f32
    %64 = vector.broadcast %cst_22 : f32 to vector<8x1024xf32>
    %65 = arith.select %23, %63, %64 : vector<8x1024xi1>, vector<8x1024xf32>
    %66 = arith.mulf %65, %65 : vector<8x1024xf32>
    %cst_23 = arith.constant dense<0.000000e+00> : vector<8xf32>
    %67 = vector.multi_reduction <add>, %66, %cst_23 [1] : vector<8x1024xf32> to vector<8xf32>
    %68 = vector.shape_cast %67 : vector<8xf32> to vector<8x1xf32>
    %69 = vector.broadcast %cst : f32 to vector<8x1xf32>
    %70 = arith.mulf %68, %69 : vector<8x1xf32>
    %71 = vector.broadcast %cst_6 : f32 to vector<8x1xf32>
    %72 = arith.addf %70, %71 : vector<8x1xf32>
    %73 = math.rsqrt %72 : vector<8x1xf32>
    %cst_24 = arith.constant 0.000000e+00 : f32
    %74 = vector.broadcast %cst_24 : f32 to vector<8x1xf32>
    %75 = arith.subf %74, %61 : vector<8x1xf32>
    %76 = arith.mulf %75, %73 : vector<8x1xf32>
    %77 = vector.broadcast %73 : vector<8x1xf32> to vector<8x1024xf32>
    %78 = arith.mulf %55, %77 : vector<8x1024xf32>
    %79 = vector.broadcast %76 : vector<8x1xf32> to vector<8x1024xf32>
    %80 = arith.addf %78, %79 : vector<8x1024xf32>
    %cst_25 = arith.constant 0.000000e+00 : f32
    %81 = vector.broadcast %cst_25 : f32 to vector<8x1024xf32>
    %82 = arith.cmpf oge, %80, %81 : vector<8x1024xf32>
    %83 = vector.broadcast %25 : vector<8x1xf32> to vector<8x1024xf32>
    %84 = arith.mulf %83, %80 : vector<8x1024xf32>
    %85 = arith.select %82, %80, %84 : vector<8x1024xi1>, vector<8x1024xf32>
    %86 = arith.index_cast %c0_i32_7 : i32 to index
    %c0_26 = arith.constant 0 : index
    %c0_27 = arith.constant 0 : index
    %87 = vector.load %arg4[%86, %c0_26, %c0_27] : memref<1x8x1024xf32, #tpu.memory_space<vmem>>, vector<1x8x1024xf32>
    %88 = vector.shape_cast %87 : vector<1x8x1024xf32> to vector<8x1024xf32>
    %89 = vector.shape_cast %85 : vector<8x1024xf32> to vector<1x8x1024xf32>
    tpu.vector_store %arg4[%86, %c0_26, %c0_27], %89 {strides = array<i32>} : memref<1x8x1024xf32, #tpu.memory_space<vmem>>, vector<1x8x1024xf32>,
    %c1_i32_28 = arith.constant 1 : i32
    return
  }
  func.func @transform_0(%arg0: i32) -> (i32, i32, i32) {
    %c0_i32 = arith.constant 0 : i32
    %c0_i32_0 = arith.constant 0 : i32
    %c0_i32_1 = arith.constant 0 : i32
    return %arg0, %c0_i32, %c0_i32_0 : i32, i32, i32
  }
  func.func @transform_1(%arg0: i32) -> (i32, i32) {
    %c0_i32 = arith.constant 0 : i32
    %c0_i32_0 = arith.constant 0 : i32
    %c0_i32_1 = arith.constant 0 : i32
    return %c0_i32, %c0_i32_0 : i32, i32
  }
  func.func @transform_2(%arg0: i32) -> (i32, i32, i32) {
    %c0_i32 = arith.constant 0 : i32
    %c0_i32_0 = arith.constant 0 : i32
    %c0_i32_1 = arith.constant 0 : i32
    %c0_i32_2 = arith.constant 0 : i32
    return %c0_i32, %c0_i32_0, %c0_i32_1 : i32, i32, i32
  }
  func.func @transform_3(%arg0: i32) -> (i32, i32, i32) {
    %c0_i32 = arith.constant 0 : i32
    %c0_i32_0 = arith.constant 0 : i32
    %c0_i32_1 = arith.constant 0 : i32
    return %arg0, %c0_i32, %c0_i32_0 : i32, i32, i32
  }
}

</mosaic_0001>

<llo_original>
// kernel: tpu_custom_call.1
$region0: #{tpu_custom_call.1}
  #allocation0 [shape = 'u32[]', space=smem, size = 0x4, offset = 0x4, fixed_abs, tag = 'smem constant byte address 0x4 - core index']
  #allocation1 [shape = 'u32[72,128]{1,0:T(1,128)}', space=vmem, size = 0x9000, scoped, tag = 'internal scratch']
  %s0 = inlined_call_operand.hbm [shape: f32[2,4,1152], index: 0, kind: input, shape index: {}]
  %s1 = inlined_call_operand.vmem [shape: f32[8,36], index: 1, kind: input, shape index: {}]
  %s2 = inlined_call_operand.vmem [shape: f32[2,8,1], index: 2, kind: input, shape index: {}]
  %s3 = inlined_call_operand.hbm [shape: f32[2,8,1024], index: 3, kind: output, shape index: {}]
  %s4 = sld [smem:[#allocation0]]
  $region49: #{tpu_custom_call.1} parent=0
    _
  %s6 = ssub.s32 1, %s4
  %s7 = scalar_select 0, %s6, %s4
  $region1: #{tpu_custom_call.1} parent=0
    #allocation2 [shape = 'u8[36864]{0}', space=vmem, size = 0x9000, scoped, tag = 'input window, operand 0']
    #allocation3 [shape = 's32[2]{0}', space=sflag, size = 0x8, scoped, tag = 'scoped memory for tpu_custom_call.1']
    #allocation4 [shape = 's32[2]{0}', space=sflag, size = 0x8, scoped, tag = 'scoped memory for tpu_custom_call.1']
    #allocation5 [shape = 'u8[65536]{0}', space=vmem, size = 0x10000, scoped, tag = 'output window, operand 0']
    %8 = vsyncpa [#allocation3], 0
    %s9 = scalar_lea.sflag [#allocation3], 1
    %10 = vsyncpa %s9, 0
    %11 = vsyncpa [#allocation4], 0
    %s12 = scalar_lea.sflag [#allocation4], 1
    %13 = vsyncpa %s12, 0
    loop: start=0, step=1, limit=4
    $region2: #{tpu_custom_call.1} parent=1 // loop_pre_header
      _
    $region3: #{tpu_custom_call.1} parent=1 // loop_header
      %s15 = sphi 0, %s19
      %p16 = scmp.ge.s32.totalorder %s15, 4
      %s25 = sphi 0, %s27
      %s28 = sphi 0, %s25
      %s29 = sphi 0, %s28
      %s45 = sphi 0, %s29
      %s49 = sphi 0, %s49
      %s51 = sphi 0, %s49
      %s52 = sphi 0, %s51
      %s66 = sphi 0, %s52
      %s70 = sphi 0, %s70
      %s72 = sphi 0, %s70
      %s73 = sphi 0, %s72
      %s87 = sphi 0, %s73
      %s93 = sphi 0, %s95
      %s96 = sphi 0, %s93
      %s97 = sphi 0, %s96
      %s113 = sphi 0, %s97
    $region4: #{tpu_custom_call.1} parent=1 // loop_header_branch
      %18 = sbr.rel (%p16) target = $region8
    $region5: #{tpu_custom_call.1} parent=1 // loop_body
      %s20 = ssub.s32 %s15, 1
      %s21 = ssub.s32 %s15, 2
      %s22 = sadd.s32 %s15, 1
      %s23 = ssub.s32 %s15, %s22
      %p24 = scmp.eq.s32.totalorder %s23, 0
      %s26 = sadd.s32 %s25, 1
      %s27 = scalar_select %p24, %s25, %s26
      %p30 = pneg %p24
      %p31 = scmp.eq.s32.totalorder %s15, 1
      %p32 = por %p30, %p31
      %p33 = scmp.ne.s32.totalorder %s25, %s28
      %p34 = scmp.eq.s32.totalorder %s15, 0
      %p35 = por %p33, %p34
      %p36 = scmp.ne.s32.totalorder %s25, %s28
      %p37 = scmp.eq.s32.totalorder %s20, 1
      %p38 = por %p36, %p37
      %p39 = scmp.ne.s32.totalorder %s28, %s29
      %p40 = scmp.eq.s32.totalorder %s20, 0
      %p41 = por %p39, %p40
      %p42 = scmp.ne.s32.totalorder %s28, %s29
      %p43 = scmp.eq.s32.totalorder %s21, 1
      %p44 = por %p42, %p43
      %p46 = scmp.ne.s32.totalorder %s29, %s45
      %p47 = scmp.eq.s32.totalorder %s21, 0
      %p48 = por %p46, %p47
      %s50 = sadd.s32 %s49, 1
      %p53 = scmp.eq.s32.totalorder %s15, 1
      %p54 = scmp.ne.s32.totalorder %s49, %s51
      %p55 = scmp.eq.s32.totalorder %s15, 0
      %p56 = por %p54, %p55
      %p57 = scmp.ne.s32.totalorder %s49, %s51
      %p58 = scmp.eq.s32.totalorder %s20, 1
      %p59 = por %p57, %p58
      %p60 = scmp.ne.s32.totalorder %s51, %s52
      %p61 = scmp.eq.s32.totalorder %s20, 0
      %p62 = por %p60, %p61
      %p63 = scmp.ne.s32.totalorder %s51, %s52
      %p64 = scmp.eq.s32.totalorder %s21, 1
      %p65 = por %p63, %p64
      %p67 = scmp.ne.s32.totalorder %s52, %s66
      %p68 = scmp.eq.s32.totalorder %s21, 0
      %p69 = por %p67, %p68
      %s71 = sadd.s32 %s70, 1
      %p74 = scmp.eq.s32.totalorder %s15, 1
      %p75 = scmp.ne.s32.totalorder %s70, %s72
      %p76 = scmp.eq.s32.totalorder %s15, 0
      %p77 = por %p75, %p76
      %p78 = scmp.ne.s32.totalorder %s70, %s72
      %p79 = scmp.eq.s32.totalorder %s20, 1
      %p80 = por %p78, %p79
      %p81 = scmp.ne.s32.totalorder %s72, %s73
      %p82 = scmp.eq.s32.totalorder %s20, 0
      %p83 = por %p81, %p82
      %p84 = scmp.ne.s32.totalorder %s72, %s73
      %p85 = scmp.eq.s32.totalorder %s21, 1
      %p86 = por %p84, %p85
      %p88 = scmp.ne.s32.totalorder %s73, %s87
      %p89 = scmp.eq.s32.totalorder %s21, 0
      %p90 = por %p88, %p89
      %s91 = ssub.s32 %s15, %s22
      %p92 = scmp.eq.s32.totalorder %s91, 0
      %s94 = sadd.s32 %s93, 1
      %s95 = scalar_select %p92, %s93, %s94
      %p98 = pneg %p92
      %p99 = scmp.eq.s32.totalorder %s15, 1
      %p100 = por %p98, %p99
      %p101 = scmp.ne.s32.totalorder %s93, %s96
      %p102 = scmp.eq.s32.totalorder %s15, 0
      %p103 = por %p101, %p102
      %p104 = scmp.ne.s32.totalorder %s93, %s96
      %p105 = scmp.eq.s32.totalorder %s20, 1
      %p106 = por %p104, %p105
      %p107 = scmp.ne.s32.totalorder %s96, %s97
      %p108 = scmp.eq.s32.totalorder %s20, 0
      %p109 = por %p107, %p108
      %p110 = scmp.ne.s32.totalorder %s96, %s97
      %p111 = scmp.eq.s32.totalorder %s21, 1
      %p112 = por %p110, %p111
      %p114 = scmp.ne.s32.totalorder %s97, %s113
      %p115 = scmp.eq.s32.totalorder %s21, 0
      %p116 = por %p114, %p115
      %p117 = scmp.le.s32.totalorder 1, %s15
      %p118 = scmp.lt.s32.totalorder %s15, 3
      %p119 = pnand %p117, %p118
      %p120 = pneg %p119
      // Predicated region
      $region9: #{tpu_custom_call.1} parent=5 // pred_check
        _
      $region10: #{tpu_custom_call.1} parent=5 // pred_check_branch
        %122 = sbr.rel (%p119) target = $region12
      $region11: #{tpu_custom_call.1} parent=5 // pred_region
        %s123 = ssub.s32 %s15, 1
        // Predicated region
        $region13: #{tpu_custom_call.1} parent=11 // pred_check
          %p124 = pneg %p62
        $region14: #{tpu_custom_call.1} parent=11 // pred_check_branch
          %126 = sbr.rel (%p124) target = $region16
        $region15: #{tpu_custom_call.1} parent=11 // pred_region
          _
        $region16: #{tpu_custom_call.1} parent=11 // pred_fallthru
          _
        // Predicated region
        $region17: #{tpu_custom_call.1} parent=11 // pred_check
          %p127 = pneg %p83
        $region18: #{tpu_custom_call.1} parent=11 // pred_check_branch
          %129 = sbr.rel (%p127) target = $region20
        $region19: #{tpu_custom_call.1} parent=11 // pred_region
          _
        $region20: #{tpu_custom_call.1} parent=11 // pred_fallthru
          _
      $region12: #{tpu_custom_call.1} parent=5 // pred_fallthru
        _
      %p130 = scmp.lt.s32.totalorder %s15, 2
      // Predicated region
      $region21: #{tpu_custom_call.1} parent=5 // pred_check
        %p131 = pneg %p130
      $region22: #{tpu_custom_call.1} parent=5 // pred_check_branch
        %133 = sbr.rel (%p131) target = $region24
      $region23: #{tpu_custom_call.1} parent=5 // pred_region
        // Predicated region
        $region25: #{tpu_custom_call.1} parent=23 // pred_check
          %p134 = pneg %p35
        $region26: #{tpu_custom_call.1} parent=23 // pred_check_branch
          %136 = sbr.rel (%p134) target = $region28
        $region27: #{tpu_custom_call.1} parent=23 // pred_region
          %s137 = sand.u32 %s25, 1
          %s138 = scalar_lea.sflag [#allocation3], %s137
          %s139 = sand.u32 %s25, 1
          %s140 = smul.addr %s139, 36
          %s141 = scalar_lea.vmem [#allocation2], %s140
          %143 = vsyncadd %s138, 0
          %s144 = smul.addr %s15, 9
          %s145 = smul.addr %s144, 4
          %s146 = scalar_lea.hbm %s0, %s145
          %s148 = sshll.u32 %s146, 4
          %s149 = int_to_ptr.hbm [resolvable:$true] %s148
          %s150 = sshll.u32 %s141, 4
          %s151 = int_to_ptr.vmem [resolvable:$true] %s150
          %153 = dma.hbm_to_vmem [thread:$0]  %s149, 576, %s151, %s138
        $region28: #{tpu_custom_call.1} parent=23 // pred_fallthru
          _
      $region24: #{tpu_custom_call.1} parent=5 // pred_fallthru
        _
      %p154 = scmp.le.s32.totalorder 1, %s15
      %p155 = scmp.lt.s32.totalorder %s15, 3
      %p156 = pnand %p154, %p155
      %p157 = pneg %p156
      // Predicated region
      $region29: #{tpu_custom_call.1} parent=5 // pred_check
        _
      $region30: #{tpu_custom_call.1} parent=5 // pred_check_branch
        %159 = sbr.rel (%p156) target = $region32
      $region31: #{tpu_custom_call.1} parent=5 // pred_region
        %s160 = ssub.s32 %s15, 1
        %s161 = sand.u32 %s28, 1
        %s162 = scalar_lea.sflag [#allocation3], %s161
        %s163 = sand.u32 %s28, 1
        %s164 = smul.addr %s163, 36
        %s165 = scalar_lea.vmem [#allocation2], %s164
        // Predicated region
        $region33: #{tpu_custom_call.1} parent=31 // pred_check
          %p166 = pneg %p41
        $region34: #{tpu_custom_call.1} parent=31 // pred_check_branch
          %168 = sbr.rel (%p166) target = $region36
        $region35: #{tpu_custom_call.1} parent=31 // pred_region
          %170 = dma.done %s162, 576
        $region36: #{tpu_custom_call.1} parent=31 // pred_fallthru
          _
        %s171 = sand.u32 %s28, 1
        %s172 = scalar_lea.sflag [#allocation3], %s171
        %s173 = sand.u32 %s28, 1
        %s174 = smul.addr %s173, 36
        %s175 = scalar_lea.vmem [#allocation2], %s174
        %p176 = pneg %p41
        %p177 = pneg %p38
        %p178 = pneg %p62
        %p179 = pneg %p59
        %p180 = pneg %p83
        %p181 = pneg %p80
        %p182 = pneg %p109
        %p183 = pneg %p106
        %s184 = sand.u32 %s96, 1
        %s185 = scalar_lea.sflag [#allocation4], %s184
        %s186 = sand.u32 %s96, 1
        %s187 = smul.addr %s186, 64
        %s188 = scalar_lea.vmem [#allocation5], %s187
        %v189 = vlaneseq
        %v190 = vand.u32 %v189, 127
        %v191 = vadd.s32 %v190, 128
        %v192 = vadd.s32 %v190, 256
        %v193 = vadd.s32 %v190, 384
        %v194 = vadd.s32 %v190, 512
        %v195 = vadd.s32 %v190, 640
        %v196 = vadd.s32 %v190, 768
        %v197 = vadd.s32 %v190, 896
        %vm198 = vcmp.lt.s32.totalorder %v190, 0
        %v199 = vsub.s32 0, %v190
        %v200 = vsel %vm198, %v199, %v190
        %v201 = vand.u32 %v200, 65535
        %v202 = vshrl.u32 %v200, 16
        %v204 = vmul.u32 %v201, 3972
        %v205 = vmul.u32 %v201, 63550
        %v206 = vmul.u32 %v202, 3972
        %v207 = vmul.u32 %v202, 63550
        %v208 = vshll.u32 %v205, 16
        %v209 = vshrl.u32 %v205, 16
        %v210 = vshll.u32 %v206, 16
        %v211 = vshrl.u32 %v206, 16
        %vm212 = vc.u32 %v204, %v208
        %v213 = vsel %vm212, 1, 0
        %v214 = vadd.s32 %v204, %v208
        %v215 = vadd.s32 %v207, %v213
        %vm216 = vc.u32 %v214, %v210
        %v217 = vsel %vm216, 1, 0
        %v218 = vadd.s32 %v214, %v210
        %v219 = vadd.s32 %v215, %v217
        %v220 = vadd.s32 %v219, %v209
        %v221 = vadd.s32 %v220, %v211
        %v222 = vshrl.u32 %v221, 5
        %v223 = vmul.u32 %v222, 33
        %v224 = vsub.s32 %v200, %v223
        %v225 = vsub.s32 0, %v224
        %v226 = vsel %vm198, %v225, %v224
        %vm227 = vcmp.lt.s32.totalorder %v191, 0
        %v228 = vsub.s32 0, %v191
        %v229 = vsel %vm227, %v228, %v191
        %v230 = vand.u32 %v229, 65535
        %v231 = vshrl.u32 %v229, 16
        %v233 = vmul.u32 %v230, 3972
        %v234 = vmul.u32 %v230, 63550
        %v235 = vmul.u32 %v231, 3972
        %v236 = vmul.u32 %v231, 63550
        %v237 = vshll.u32 %v234, 16
        %v238 = vshrl.u32 %v234, 16
        %v239 = vshll.u32 %v235, 16
        %v240 = vshrl.u32 %v235, 16
        %vm241 = vc.u32 %v233, %v237
        %v242 = vsel %vm241, 1, 0
        %v243 = vadd.s32 %v233, %v237
        %v244 = vadd.s32 %v236, %v242
        %vm245 = vc.u32 %v243, %v239
        %v246 = vsel %vm245, 1, 0
        %v247 = vadd.s32 %v243, %v239
        %v248 = vadd.s32 %v244, %v246
        %v249 = vadd.s32 %v248, %v238
        %v250 = vadd.s32 %v249, %v240
        %v251 = vshrl.u32 %v250, 5
        %v252 = vmul.u32 %v251, 33
        %v253 = vsub.s32 %v229, %v252
        %v254 = vsub.s32 0, %v253
        %v255 = vsel %vm227, %v254, %v253
        %vm256 = vcmp.lt.s32.totalorder %v192, 0
        %v257 = vsub.s32 0, %v192
        %v258 = vsel %vm256, %v257, %v192
        %v259 = vand.u32 %v258, 65535
        %v260 = vshrl.u32 %v258, 16
        %v262 = vmul.u32 %v259, 3972
        %v263 = vmul.u32 %v259, 63550
        %v264 = vmul.u32 %v260, 3972
        %v265 = vmul.u32 %v260, 63550
        %v266 = vshll.u32 %v263, 16
        %v267 = vshrl.u32 %v263, 16
        %v268 = vshll.u32 %v264, 16
        %v269 = vshrl.u32 %v264, 16
        %vm270 = vc.u32 %v262, %v266
        %v271 = vsel %vm270, 1, 0
        %v272 = vadd.s32 %v262, %v266
        %v273 = vadd.s32 %v265, %v271
        %vm274 = vc.u32 %v272, %v268
        %v275 = vsel %vm274, 1, 0
        %v276 = vadd.s32 %v272, %v268
        %v277 = vadd.s32 %v273, %v275
        %v278 = vadd.s32 %v277, %v267
        %v279 = vadd.s32 %v278, %v269
        %v280 = vshrl.u32 %v279, 5
        %v281 = vmul.u32 %v280, 33
        %v282 = vsub.s32 %v258, %v281
        %v283 = vsub.s32 0, %v282
        %v284 = vsel %vm256, %v283, %v282
        %vm285 = vcmp.lt.s32.totalorder %v193, 0
        %v286 = vsub.s32 0, %v193
        %v287 = vsel %vm285, %v286, %v193
        %v288 = vand.u32 %v287, 65535
        %v289 = vshrl.u32 %v287, 16
        %v291 = vmul.u32 %v288, 3972
        %v292 = vmul.u32 %v288, 63550
        %v293 = vmul.u32 %v289, 3972
        %v294 = vmul.u32 %v289, 63550
        %v295 = vshll.u32 %v292, 16
        %v296 = vshrl.u32 %v292, 16
        %v297 = vshll.u32 %v293, 16
        %v298 = vshrl.u32 %v293, 16
        %vm299 = vc.u32 %v291, %v295
        %v300 = vsel %vm299, 1, 0
        %v301 = vadd.s32 %v291, %v295
        %v302 = vadd.s32 %v294, %v300
        %vm303 = vc.u32 %v301, %v297
        %v304 = vsel %vm303, 1, 0
        %v305 = vadd.s32 %v301, %v297
        %v306 = vadd.s32 %v302, %v304
        %v307 = vadd.s32 %v306, %v296
        %v308 = vadd.s32 %v307, %v298
        %v309 = vshrl.u32 %v308, 5
        %v310 = vmul.u32 %v309, 33
        %v311 = vsub.s32 %v287, %v310
        %v312 = vsub.s32 0, %v311
        %v313 = vsel %vm285, %v312, %v311
        %vm314 = vcmp.lt.s32.totalorder %v194, 0
        %v315 = vsub.s32 0, %v194
        %v316 = vsel %vm314, %v315, %v194
        %v317 = vand.u32 %v316, 65535
        %v318 = vshrl.u32 %v316, 16
        %v320 = vmul.u32 %v317, 3972
        %v321 = vmul.u32 %v317, 63550
        %v322 = vmul.u32 %v318, 3972
        %v323 = vmul.u32 %v318, 63550
        %v324 = vshll.u32 %v321, 16
        %v325 = vshrl.u32 %v321, 16
        %v326 = vshll.u32 %v322, 16
        %v327 = vshrl.u32 %v322, 16
        %vm328 = vc.u32 %v320, %v324
        %v329 = vsel %vm328, 1, 0
        %v330 = vadd.s32 %v320, %v324
        %v331 = vadd.s32 %v323, %v329
        %vm332 = vc.u32 %v330, %v326
        %v333 = vsel %vm332, 1, 0
        %v334 = vadd.s32 %v330, %v326
        %v335 = vadd.s32 %v331, %v333
        %v336 = vadd.s32 %v335, %v325
        %v337 = vadd.s32 %v336, %v327
        %v338 = vshrl.u32 %v337, 5
        %v339 = vmul.u32 %v338, 33
        %v340 = vsub.s32 %v316, %v339
        %v341 = vsub.s32 0, %v340
        %v342 = vsel %vm314, %v341, %v340
        %vm343 = vcmp.lt.s32.totalorder %v195, 0
        %v344 = vsub.s32 0, %v195
        %v345 = vsel %vm343, %v344, %v195
        %v346 = vand.u32 %v345, 65535
        %v347 = vshrl.u32 %v345, 16
        %v349 = vmul.u32 %v346, 3972
        %v350 = vmul.u32 %v346, 63550
        %v351 = vmul.u32 %v347, 3972
        %v352 = vmul.u32 %v347, 63550
        %v353 = vshll.u32 %v350, 16
        %v354 = vshrl.u32 %v350, 16
        %v355 = vshll.u32 %v351, 16
        %v356 = vshrl.u32 %v351, 16
        %vm357 = vc.u32 %v349, %v353
        %v358 = vsel %vm357, 1, 0
        %v359 = vadd.s32 %v349, %v353
        %v360 = vadd.s32 %v352, %v358
        %vm361 = vc.u32 %v359, %v355
        %v362 = vsel %vm361, 1, 0
        %v363 = vadd.s32 %v359, %v355
        %v364 = vadd.s32 %v360, %v362
        %v365 = vadd.s32 %v364, %v354
        %v366 = vadd.s32 %v365, %v356
        %v367 = vshrl.u32 %v366, 5
        %v368 = vmul.u32 %v367, 33
        %v369 = vsub.s32 %v345, %v368
        %v370 = vsub.s32 0, %v369
        %v371 = vsel %vm343, %v370, %v369
        %vm372 = vcmp.lt.s32.totalorder %v196, 0
        %v373 = vsub.s32 0, %v196
        %v374 = vsel %vm372, %v373, %v196
        %v375 = vand.u32 %v374, 65535
        %v376 = vshrl.u32 %v374, 16
        %v378 = vmul.u32 %v375, 3972
        %v379 = vmul.u32 %v375, 63550
        %v380 = vmul.u32 %v376, 3972
        %v381 = vmul.u32 %v376, 63550
        %v382 = vshll.u32 %v379, 16
        %v383 = vshrl.u32 %v379, 16
        %v384 = vshll.u32 %v380, 16
        %v385 = vshrl.u32 %v380, 16
        %vm386 = vc.u32 %v378, %v382
        %v387 = vsel %vm386, 1, 0
        %v388 = vadd.s32 %v378, %v382
        %v389 = vadd.s32 %v381, %v387
        %vm390 = vc.u32 %v388, %v384
        %v391 = vsel %vm390, 1, 0
        %v392 = vadd.s32 %v388, %v384
        %v393 = vadd.s32 %v389, %v391
        %v394 = vadd.s32 %v393, %v383
        %v395 = vadd.s32 %v394, %v385
        %v396 = vshrl.u32 %v395, 5
        %v397 = vmul.u32 %v396, 33
        %v398 = vsub.s32 %v374, %v397
        %v399 = vsub.s32 0, %v398
        %v400 = vsel %vm372, %v399, %v398
        %vm401 = vcmp.lt.s32.totalorder %v197, 0
        %v402 = vsub.s32 0, %v197
        %v403 = vsel %vm401, %v402, %v197
        %v404 = vand.u32 %v403, 65535
        %v405 = vshrl.u32 %v403, 16
        %v407 = vmul.u32 %v404, 3972
        %v408 = vmul.u32 %v404, 63550
        %v409 = vmul.u32 %v405, 3972
        %v410 = vmul.u32 %v405, 63550
        %v411 = vshll.u32 %v408, 16
        %v412 = vshrl.u32 %v408, 16
        %v413 = vshll.u32 %v409, 16
        %v414 = vshrl.u32 %v409, 16
        %vm415 = vc.u32 %v407, %v411
        %v416 = vsel %vm415, 1, 0
        %v417 = vadd.s32 %v407, %v411
        %v418 = vadd.s32 %v410, %v416
        %vm419 = vc.u32 %v417, %v413
        %v420 = vsel %vm419, 1, 0
        %v421 = vadd.s32 %v417, %v413
        %v422 = vadd.s32 %v418, %v420
        %v423 = vadd.s32 %v422, %v412
        %v424 = vadd.s32 %v423, %v414
        %v425 = vshrl.u32 %v424, 5
        %v426 = vmul.u32 %v425, 33
        %v427 = vsub.s32 %v403, %v426
        %v428 = vsub.s32 0, %v427
        %v429 = vsel %vm401, %v428, %v427
        %vm430 = vcmp.ne.s32.totalorder %v226, 0
        %vm431 = vcmp.ne.s32.totalorder %v255, 0
        %vm432 = vcmp.ne.s32.totalorder %v284, 0
        %vm433 = vcmp.ne.s32.totalorder %v313, 0
        %vm434 = vcmp.ne.s32.totalorder %v342, 0
        %vm435 = vcmp.ne.s32.totalorder %v371, 0
        %vm436 = vcmp.ne.s32.totalorder %v400, 0
        %vm437 = vcmp.ne.s32.totalorder %v429, 0
        %vm438 = vcmp.lt.s32.totalorder %v226, 0
        %vm439 = vcmp.lt.s32.totalorder %v255, 0
        %vm440 = vcmp.lt.s32.totalorder %v284, 0
        %vm441 = vcmp.lt.s32.totalorder %v313, 0
        %vm442 = vcmp.lt.s32.totalorder %v342, 0
        %vm443 = vcmp.lt.s32.totalorder %v371, 0
        %vm444 = vcmp.lt.s32.totalorder %v400, 0
        %vm445 = vcmp.lt.s32.totalorder %v429, 0
        %vm446 = vmand %vm438, %vm430
        %vm447 = vmand %vm439, %vm431
        %vm448 = vmand %vm440, %vm432
        %vm449 = vmand %vm441, %vm433
        %vm450 = vmand %vm442, %vm434
        %vm451 = vmand %vm443, %vm435
        %vm452 = vmand %vm444, %vm436
        %vm453 = vmand %vm445, %vm437
        %v454 = vadd.s32 %v226, 33
        %v455 = vadd.s32 %v255, 33
        %v456 = vadd.s32 %v284, 33
        %v457 = vadd.s32 %v313, 33
        %v458 = vadd.s32 %v342, 33
        %v459 = vadd.s32 %v371, 33
        %v460 = vadd.s32 %v400, 33
        %v461 = vadd.s32 %v429, 33
        %v462 = vsel %vm446, %v454, %v226
        %v463 = vsel %vm447, %v455, %v255
        %v464 = vsel %vm448, %v456, %v284
        %v465 = vsel %vm449, %v457, %v313
        %v466 = vsel %vm450, %v458, %v342
        %v467 = vsel %vm451, %v459, %v371
        %v468 = vsel %vm452, %v460, %v400
        %v469 = vsel %vm453, %v461, %v429
        %vm470 = vcmp.lt.s32.totalorder %v462, 31
        %vm471 = vcmp.lt.s32.totalorder %v463, 31
        %vm472 = vcmp.lt.s32.totalorder %v464, 31
        %vm473 = vcmp.lt.s32.totalorder %v465, 31
        %vm474 = vcmp.lt.s32.totalorder %v466, 31
        %vm475 = vcmp.lt.s32.totalorder %v467, 31
        %vm476 = vcmp.lt.s32.totalorder %v468, 31
        %vm477 = vcmp.lt.s32.totalorder %v469, 31
        %vm478 = vcmp.lt.s32.totalorder %v190, 1023
        %vm479 = vcmp.lt.s32.totalorder %v191, 1023
        %vm480 = vcmp.lt.s32.totalorder %v192, 1023
        %vm481 = vcmp.lt.s32.totalorder %v193, 1023
        %vm482 = vcmp.lt.s32.totalorder %v194, 1023
        %vm483 = vcmp.lt.s32.totalorder %v195, 1023
        %vm484 = vcmp.lt.s32.totalorder %v196, 1023
        %vm485 = vcmp.lt.s32.totalorder %v197, 1023
        %vm486 = vmand %vm470, %vm478
        %vm487 = vmand %vm471, %vm479
        %vm488 = vmand %vm472, %vm480
        %vm489 = vmand %vm473, %vm481
        %vm490 = vmand %vm474, %vm482
        %vm491 = vmand %vm475, %vm483
        %vm492 = vmand %vm476, %vm484
        %vm493 = vmand %vm477, %vm485
        %v494 = vsel %vm486, 1, 0
        %v495 = vsel %vm487, 1, 0
        %v496 = vsel %vm488, 1, 0
        %v497 = vsel %vm489, 1, 0
        %v498 = vsel %vm490, 1, 0
        %v499 = vsel %vm491, 1, 0
        %v500 = vsel %vm492, 1, 0
        %v501 = vsel %vm493, 1, 0
        %vm502 = vcmp.eq.s32.totalorder %v494, 1
        %vm503 = vcmp.eq.s32.totalorder %v495, 1
        %vm504 = vcmp.eq.s32.totalorder %v496, 1
        %vm505 = vcmp.eq.s32.totalorder %v497, 1
        %vm506 = vcmp.eq.s32.totalorder %v498, 1
        %vm507 = vcmp.eq.s32.totalorder %v499, 1
        %vm508 = vcmp.eq.s32.totalorder %v500, 1
        %vm509 = vcmp.eq.s32.totalorder %v501, 1
        %s510 = scalar_lea.vmem %s2, 8
        %v511 = vld [vmem:[%s510] sm:$0xff]
        %v512 = vld [vmem:[%s1] sm:$0xff]
        %v513 = vld [vmem:[%s165] sm:$0xff]
        %v514 = vld [vmem:[%s165 + $0x8] sm:$0xff]
        %v515 = vld [vmem:[%s165 + $0x10] sm:$0xff]
        %v516 = vld [vmem:[%s165 + $0x18] sm:$0xff]
        %v517 = vld [vmem:[%s165] sm:$0xff]
        %v518 = vld [vmem:[%s165 + $0x8] sm:$0xff]
        %v519 = vld [vmem:[%s165 + $0x10] sm:$0xff]
        %v520 = vld [vmem:[%s165 + $0x18] sm:$0xff]
        %v521 = vld [vmem:[%s165 + $0x20] sm:$0xf]
        %526 = vst [vmem:[#allocation1] ss:$2 sm:$0xff] %v513
        %s527 = scalar_lea.vmem [#allocation1], 16
        %528 = vst [vmem:[%s527] ss:$2 sm:$0xff] %v514
        %s529 = scalar_lea.vmem [#allocation1], 32
        %530 = vst [vmem:[%s529] ss:$2 sm:$0xff] %v515
        %s531 = scalar_lea.vmem [#allocation1], 48
        %532 = vst [vmem:[%s531] ss:$2 sm:$0xff] %v516
        %v533 = vld.sshfl [vmem:[#allocation1] sm:$0xff pattern:$0x75316420]
        %v534 = vld.sshfl [vmem:[#allocation1 + $0x8] sm:$0xff pattern:$0x75316420]
        %v535 = vld.sshfl [vmem:[#allocation1 + $0x10] sm:$0xff pattern:$0x75316420]
        %v536 = vld.sshfl [vmem:[#allocation1 + $0x18] sm:$0xff pattern:$0x75316420]
        %v537 = vld.sshfl [vmem:[#allocation1 + $0x20] sm:$0xff pattern:$0x75316420]
        %v538 = vld.sshfl [vmem:[#allocation1 + $0x28] sm:$0xff pattern:$0x75316420]
        %v539 = vld.sshfl [vmem:[#allocation1 + $0x30] sm:$0xff pattern:$0x75316420]
        %v540 = vld.sshfl [vmem:[#allocation1 + $0x38] sm:$0xff pattern:$0x75316420]
        %s554 = scalar_lea.vmem [#allocation1], 1
        %555 = vst [vmem:[%s554] ss:$2 sm:$0xff] %v517
        %s556 = scalar_lea.vmem [#allocation1], 17
        %557 = vst [vmem:[%s556] ss:$2 sm:$0xff] %v518
        %s558 = scalar_lea.vmem [#allocation1], 33
        %559 = vst [vmem:[%s558] ss:$2 sm:$0xff] %v519
        %s560 = scalar_lea.vmem [#allocation1], 49
        %561 = vst [vmem:[%s560] ss:$2 sm:$0xff] %v520
        %v562 = vld.sshfl [vmem:[#allocation1] sm:$0xff pattern:$0x75316420]
        %v563 = vld.sshfl [vmem:[#allocation1 + $0x8] sm:$0xff pattern:$0x75316420]
        %v564 = vld.sshfl [vmem:[#allocation1 + $0x10] sm:$0xff pattern:$0x75316420]
        %v565 = vld.sshfl [vmem:[#allocation1 + $0x18] sm:$0xff pattern:$0x75316420]
        %v566 = vld.sshfl [vmem:[#allocation1 + $0x20] sm:$0xff pattern:$0x75316420]
        %v567 = vld.sshfl [vmem:[#allocation1 + $0x28] sm:$0xff pattern:$0x75316420]
        %v568 = vld.sshfl [vmem:[#allocation1 + $0x30] sm:$0xff pattern:$0x75316420]
        %v569 = vld.sshfl [vmem:[#allocation1 + $0x38] sm:$0xff pattern:$0x75316420]
        %570 = vst [vmem:[%s554] ss:$2 sm:$0xff] %v521
        %v571 = vld.sshfl [vmem:[#allocation1] sm:$0xff pattern:$0x75316420]
        %572 = vrot.lane.b32.xlu0 %v562, 127
        %v573 = vpop.permute.xlu0 %572
        %574 = vrot.lane.b32.xlu0 %v563, 127
        %v575 = vpop.permute.xlu0 %574
        %576 = vrot.lane.b32.xlu0 %v564, 127
        %v577 = vpop.permute.xlu0 %576
        %578 = vrot.lane.b32.xlu0 %v565, 127
        %v579 = vpop.permute.xlu0 %578
        %580 = vrot.lane.b32.xlu0 %v566, 127
        %v581 = vpop.permute.xlu0 %580
        %582 = vrot.lane.b32.xlu0 %v567, 127
        %v583 = vpop.permute.xlu0 %582
        %584 = vrot.lane.b32.xlu0 %v568, 127
        %v585 = vpop.permute.xlu0 %584
        %586 = vrot.lane.b32.xlu0 %v569, 127
        %v587 = vpop.permute.xlu0 %586
        %588 = vrot.lane.b32.xlu0 %v571, 127
        %v589 = vpop.permute.xlu0 %588
        %vm590 = vcmask 1039360
        %v591 = vsel %vm590, %v573, %v575
        %v592 = vsel %vm590, %v575, %v577
        %v593 = vsel %vm590, %v577, %v579
        %v594 = vsel %vm590, %v579, %v581
        %v595 = vsel %vm590, %v581, %v583
        %v596 = vsel %vm590, %v583, %v585
        %v597 = vsel %vm590, %v585, %v587
        %v598 = vsel %vm590, %v587, %v589
        %607 = vst [vmem:[#allocation1] ss:$2 sm:$0xff] %v517
        %s608 = scalar_lea.vmem [#allocation1], 16
        %609 = vst [vmem:[%s608] ss:$2 sm:$0xff] %v518
        %s610 = scalar_lea.vmem [#allocation1], 32
        %611 = vst [vmem:[%s610] ss:$2 sm:$0xff] %v519
        %s612 = scalar_lea.vmem [#allocation1], 48
        %613 = vst [vmem:[%s612] ss:$2 sm:$0xff] %v520
        %v614 = vld.sshfl [vmem:[#allocation1] sm:$0xff pattern:$0x75316420]
        %v615 = vld.sshfl [vmem:[#allocation1 + $0x8] sm:$0xff pattern:$0x75316420]
        %v616 = vld.sshfl [vmem:[#allocation1 + $0x10] sm:$0xff pattern:$0x75316420]
        %v617 = vld.sshfl [vmem:[#allocation1 + $0x18] sm:$0xff pattern:$0x75316420]
        %v618 = vld.sshfl [vmem:[#allocation1 + $0x20] sm:$0xff pattern:$0x75316420]
        %v619 = vld.sshfl [vmem:[#allocation1 + $0x28] sm:$0xff pattern:$0x75316420]
        %v620 = vld.sshfl [vmem:[#allocation1 + $0x30] sm:$0xff pattern:$0x75316420]
        %v621 = vld.sshfl [vmem:[#allocation1 + $0x38] sm:$0xff pattern:$0x75316420]
        %622 = vst [vmem:[#allocation1] ss:$2 sm:$0xff] %v521
        %v623 = vld.sshfl [vmem:[#allocation1] sm:$0xff pattern:$0x75316420]
        %624 = vrot.lane.b32.xlu0 %v614, 126
        %v625 = vpop.permute.xlu0 %624
        %626 = vrot.lane.b32.xlu0 %v615, 126
        %v627 = vpop.permute.xlu0 %626
        %628 = vrot.lane.b32.xlu0 %v616, 126
        %v629 = vpop.permute.xlu0 %628
        %630 = vrot.lane.b32.xlu0 %v617, 126
        %v631 = vpop.permute.xlu0 %630
        %632 = vrot.lane.b32.xlu0 %v618, 126
        %v633 = vpop.permute.xlu0 %632
        %634 = vrot.lane.b32.xlu0 %v619, 126
        %v635 = vpop.permute.xlu0 %634
        %636 = vrot.lane.b32.xlu0 %v620, 126
        %v637 = vpop.permute.xlu0 %636
        %638 = vrot.lane.b32.xlu0 %v621, 126
        %v639 = vpop.permute.xlu0 %638
        %640 = vrot.lane.b32.xlu0 %v623, 126
        %v641 = vpop.permute.xlu0 %640
        %vm642 = vcmask 1031168
        %v643 = vsel %vm642, %v625, %v627
        %v644 = vsel %vm642, %v627, %v629
        %v645 = vsel %vm642, %v629, %v631
        %v646 = vsel %vm642, %v631, %v633
        %v647 = vsel %vm642, %v633, %v635
        %v648 = vsel %vm642, %v635, %v637
        %v649 = vsel %vm642, %v637, %v639
        %v650 = vsel %vm642, %v639, %v641
        %s659 = scalar_lea.vmem [#allocation1], 1
        %660 = vst [vmem:[%s659] ss:$2 sm:$0xff] %v517
        %s661 = scalar_lea.vmem [#allocation1], 17
        %662 = vst [vmem:[%s661] ss:$2 sm:$0xff] %v518
        %s663 = scalar_lea.vmem [#allocation1], 33
        %664 = vst [vmem:[%s663] ss:$2 sm:$0xff] %v519
        %s665 = scalar_lea.vmem [#allocation1], 49
        %666 = vst [vmem:[%s665] ss:$2 sm:$0xff] %v520
        %v667 = vld.sshfl [vmem:[#allocation1] sm:$0xff pattern:$0x75316420]
        %v668 = vld.sshfl [vmem:[#allocation1 + $0x8] sm:$0xff pattern:$0x75316420]
        %v669 = vld.sshfl [vmem:[#allocation1 + $0x10] sm:$0xff pattern:$0x75316420]
        %v670 = vld.sshfl [vmem:[#allocation1 + $0x18] sm:$0xff pattern:$0x75316420]
        %v671 = vld.sshfl [vmem:[#allocation1 + $0x20] sm:$0xff pattern:$0x75316420]
        %v672 = vld.sshfl [vmem:[#allocation1 + $0x28] sm:$0xff pattern:$0x75316420]
        %v673 = vld.sshfl [vmem:[#allocation1 + $0x30] sm:$0xff pattern:$0x75316420]
        %v674 = vld.sshfl [vmem:[#allocation1 + $0x38] sm:$0xff pattern:$0x75316420]
        %675 = vst [vmem:[%s659] ss:$2 sm:$0xff] %v521
        %v676 = vld.sshfl [vmem:[#allocation1] sm:$0xff pattern:$0x75316420]
        %677 = vrot.lane.b32.xlu0 %v667, 95
        %v678 = vpop.permute.xlu0 %677
        %679 = vrot.lane.b32.xlu0 %v668, 95
        %v680 = vpop.permute.xlu0 %679
        %681 = vrot.lane.b32.xlu0 %v669, 95
        %v682 = vpop.permute.xlu0 %681
        %683 = vrot.lane.b32.xlu0 %v670, 95
        %v684 = vpop.permute.xlu0 %683
        %685 = vrot.lane.b32.xlu0 %v671, 95
        %v686 = vpop.permute.xlu0 %685
        %687 = vrot.lane.b32.xlu0 %v672, 95
        %v688 = vpop.permute.xlu0 %687
        %689 = vrot.lane.b32.xlu0 %v673, 95
        %v690 = vpop.permute.xlu0 %689
        %691 = vrot.lane.b32.xlu0 %v674, 95
        %v692 = vpop.permute.xlu0 %691
        %693 = vrot.lane.b32.xlu0 %v676, 95
        %v694 = vpop.permute.xlu0 %693
        %vm695 = vcmask 777216
        %v696 = vsel %vm695, %v678, %v680
        %v697 = vsel %vm695, %v680, %v682
        %v698 = vsel %vm695, %v682, %v684
        %v699 = vsel %vm695, %v684, %v686
        %v700 = vsel %vm695, %v686, %v688
        %v701 = vsel %vm695, %v688, %v690
        %v702 = vsel %vm695, %v690, %v692
        %v703 = vsel %vm695, %v692, %v694
        %712 = vst [vmem:[#allocation1] ss:$2 sm:$0xff] %v517
        %s713 = scalar_lea.vmem [#allocation1], 16
        %714 = vst [vmem:[%s713] ss:$2 sm:$0xff] %v518
        %s715 = scalar_lea.vmem [#allocation1], 32
        %716 = vst [vmem:[%s715] ss:$2 sm:$0xff] %v519
        %s717 = scalar_lea.vmem [#allocation1], 48
        %718 = vst [vmem:[%s717] ss:$2 sm:$0xff] %v520
        %v719 = vld.sshfl [vmem:[#allocation1] sm:$0xff pattern:$0x75316420]
        %v720 = vld.sshfl [vmem:[#allocation1 + $0x8] sm:$0xff pattern:$0x75316420]
        %v721 = vld.sshfl [vmem:[#allocation1 + $0x10] sm:$0xff pattern:$0x75316420]
        %v722 = vld.sshfl [vmem:[#allocation1 + $0x18] sm:$0xff pattern:$0x75316420]
        %v723 = vld.sshfl [vmem:[#allocation1 + $0x20] sm:$0xff pattern:$0x75316420]
        %v724 = vld.sshfl [vmem:[#allocation1 + $0x28] sm:$0xff pattern:$0x75316420]
        %v725 = vld.sshfl [vmem:[#allocation1 + $0x30] sm:$0xff pattern:$0x75316420]
        %v726 = vld.sshfl [vmem:[#allocation1 + $0x38] sm:$0xff pattern:$0x75316420]
        %727 = vst [vmem:[#allocation1] ss:$2 sm:$0xff] %v521
        %v728 = vld.sshfl [vmem:[#allocation1] sm:$0xff pattern:$0x75316420]
        %729 = vrot.lane.b32.xlu0 %v719, 94
        %v730 = vpop.permute.xlu0 %729
        %731 = vrot.lane.b32.xlu0 %v720, 94
        %v732 = vpop.permute.xlu0 %731
        %733 = vrot.lane.b32.xlu0 %v721, 94
        %v734 = vpop.permute.xlu0 %733
        %735 = vrot.lane.b32.xlu0 %v722, 94
        %v736 = vpop.permute.xlu0 %735
        %737 = vrot.lane.b32.xlu0 %v723, 94
        %v738 = vpop.permute.xlu0 %737
        %739 = vrot.lane.b32.xlu0 %v724, 94
        %v740 = vpop.permute.xlu0 %739
        %741 = vrot.lane.b32.xlu0 %v725, 94
        %v742 = vpop.permute.xlu0 %741
        %743 = vrot.lane.b32.xlu0 %v726, 94
        %v744 = vpop.permute.xlu0 %743
        %745 = vrot.lane.b32.xlu0 %v728, 94
        %v746 = vpop.permute.xlu0 %745
        %vm747 = vcmask 769024
        %v748 = vsel %vm747, %v730, %v732
        %v749 = vsel %vm747, %v732, %v734
        %v750 = vsel %vm747, %v734, %v736
        %v751 = vsel %vm747, %v736, %v738
        %v752 = vsel %vm747, %v738, %v740
        %v753 = vsel %vm747, %v740, %v742
        %v754 = vsel %vm747, %v742, %v744
        %v755 = vsel %vm747, %v744, %v746
        %s764 = scalar_lea.vmem [#allocation1], 1
        %765 = vst [vmem:[%s764] ss:$2 sm:$0xff] %v517
        %s766 = scalar_lea.vmem [#allocation1], 17
        %767 = vst [vmem:[%s766] ss:$2 sm:$0xff] %v518
        %s768 = scalar_lea.vmem [#allocation1], 33
        %769 = vst [vmem:[%s768] ss:$2 sm:$0xff] %v519
        %s770 = scalar_lea.vmem [#allocation1], 49
        %771 = vst [vmem:[%s770] ss:$2 sm:$0xff] %v520
        %v772 = vld.sshfl [vmem:[#allocation1] sm:$0xff pattern:$0x75316420]
        %v773 = vld.sshfl [vmem:[#allocation1 + $0x8] sm:$0xff pattern:$0x75316420]
        %v774 = vld.sshfl [vmem:[#allocation1 + $0x10] sm:$0xff pattern:$0x75316420]
        %v775 = vld.sshfl [vmem:[#allocation1 + $0x18] sm:$0xff pattern:$0x75316420]
        %v776 = vld.sshfl [vmem:[#allocation1 + $0x20] sm:$0xff pattern:$0x75316420]
        %v777 = vld.sshfl [vmem:[#allocation1 + $0x28] sm:$0xff pattern:$0x75316420]
        %v778 = vld.sshfl [vmem:[#allocation1 + $0x30] sm:$0xff pattern:$0x75316420]
        %v779 = vld.sshfl [vmem:[#allocation1 + $0x38] sm:$0xff pattern:$0x75316420]
        %780 = vst [vmem:[%s764] ss:$2 sm:$0xff] %v521
        %v781 = vld.sshfl [vmem:[#allocation1] sm:$0xff pattern:$0x75316420]
        %782 = vrot.lane.b32.xlu0 %v772, 93
        %v783 = vpop.permute.xlu0 %782
        %784 = vrot.lane.b32.xlu0 %v773, 93
        %v785 = vpop.permute.xlu0 %784
        %786 = vrot.lane.b32.xlu0 %v774, 93
        %v787 = vpop.permute.xlu0 %786
        %788 = vrot.lane.b32.xlu0 %v775, 93
        %v789 = vpop.permute.xlu0 %788
        %790 = vrot.lane.b32.xlu0 %v776, 93
        %v791 = vpop.permute.xlu0 %790
        %792 = vrot.lane.b32.xlu0 %v777, 93
        %v793 = vpop.permute.xlu0 %792
        %794 = vrot.lane.b32.xlu0 %v778, 93
        %v795 = vpop.permute.xlu0 %794
        %796 = vrot.lane.b32.xlu0 %v779, 93
        %v797 = vpop.permute.xlu0 %796
        %798 = vrot.lane.b32.xlu0 %v781, 93
        %v799 = vpop.permute.xlu0 %798
        %vm800 = vcmask 760832
        %v801 = vsel %vm800, %v783, %v785
        %v802 = vsel %vm800, %v785, %v787
        %v803 = vsel %vm800, %v787, %v789
        %v804 = vsel %vm800, %v789, %v791
        %v805 = vsel %vm800, %v791, %v793
        %v806 = vsel %vm800, %v793, %v795
        %v807 = vsel %vm800, %v795, %v797
        %v808 = vsel %vm800, %v797, %v799
        %817 = vst [vmem:[#allocation1] ss:$2 sm:$0xff] %v517
        %s818 = scalar_lea.vmem [#allocation1], 16
        %819 = vst [vmem:[%s818] ss:$2 sm:$0xff] %v518
        %s820 = scalar_lea.vmem [#allocation1], 32
        %821 = vst [vmem:[%s820] ss:$2 sm:$0xff] %v519
        %s822 = scalar_lea.vmem [#allocation1], 48
        %823 = vst [vmem:[%s822] ss:$2 sm:$0xff] %v520
        %v824 = vld.sshfl [vmem:[#allocation1] sm:$0xff pattern:$0x75316420]
        %v825 = vld.sshfl [vmem:[#allocation1 + $0x8] sm:$0xff pattern:$0x75316420]
        %v826 = vld.sshfl [vmem:[#allocation1 + $0x10] sm:$0xff pattern:$0x75316420]
        %v827 = vld.sshfl [vmem:[#allocation1 + $0x18] sm:$0xff pattern:$0x75316420]
        %v828 = vld.sshfl [vmem:[#allocation1 + $0x20] sm:$0xff pattern:$0x75316420]
        %v829 = vld.sshfl [vmem:[#allocation1 + $0x28] sm:$0xff pattern:$0x75316420]
        %v830 = vld.sshfl [vmem:[#allocation1 + $0x30] sm:$0xff pattern:$0x75316420]
        %v831 = vld.sshfl [vmem:[#allocation1 + $0x38] sm:$0xff pattern:$0x75316420]
        %832 = vst [vmem:[#allocation1] ss:$2 sm:$0xff] %v521
        %v833 = vld.sshfl [vmem:[#allocation1] sm:$0xff pattern:$0x75316420]
        %834 = vrot.lane.b32.xlu0 %v824, 62
        %v835 = vpop.permute.xlu0 %834
        %836 = vrot.lane.b32.xlu0 %v825, 62
        %v837 = vpop.permute.xlu0 %836
        %838 = vrot.lane.b32.xlu0 %v826, 62
        %v839 = vpop.permute.xlu0 %838
        %840 = vrot.lane.b32.xlu0 %v827, 62
        %v841 = vpop.permute.xlu0 %840
        %842 = vrot.lane.b32.xlu0 %v828, 62
        %v843 = vpop.permute.xlu0 %842
        %844 = vrot.lane.b32.xlu0 %v829, 62
        %v845 = vpop.permute.xlu0 %844
        %846 = vrot.lane.b32.xlu0 %v830, 62
        %v847 = vpop.permute.xlu0 %846
        %848 = vrot.lane.b32.xlu0 %v831, 62
        %v849 = vpop.permute.xlu0 %848
        %850 = vrot.lane.b32.xlu0 %v833, 62
        %v851 = vpop.permute.xlu0 %850
        %vm852 = vcmask 506880
        %v853 = vsel %vm852, %v835, %v837
        %v854 = vsel %vm852, %v837, %v839
        %v855 = vsel %vm852, %v839, %v841
        %v856 = vsel %vm852, %v841, %v843
        %v857 = vsel %vm852, %v843, %v845
        %v858 = vsel %vm852, %v845, %v847
        %v859 = vsel %vm852, %v847, %v849
        %v860 = vsel %vm852, %v849, %v851
        %s869 = scalar_lea.vmem [#allocation1], 1
        %870 = vst [vmem:[%s869] ss:$2 sm:$0xff] %v517
        %s871 = scalar_lea.vmem [#allocation1], 17
        %872 = vst [vmem:[%s871] ss:$2 sm:$0xff] %v518
        %s873 = scalar_lea.vmem [#allocation1], 33
        %874 = vst [vmem:[%s873] ss:$2 sm:$0xff] %v519
        %s875 = scalar_lea.vmem [#allocation1], 49
        %876 = vst [vmem:[%s875] ss:$2 sm:$0xff] %v520
        %v877 = vld.sshfl [vmem:[#allocation1] sm:$0xff pattern:$0x75316420]
        %v878 = vld.sshfl [vmem:[#allocation1 + $0x8] sm:$0xff pattern:$0x75316420]
        %v879 = vld.sshfl [vmem:[#allocation1 + $0x10] sm:$0xff pattern:$0x75316420]
        %v880 = vld.sshfl [vmem:[#allocation1 + $0x18] sm:$0xff pattern:$0x75316420]
        %v881 = vld.sshfl [vmem:[#allocation1 + $0x20] sm:$0xff pattern:$0x75316420]
        %v882 = vld.sshfl [vmem:[#allocation1 + $0x28] sm:$0xff pattern:$0x75316420]
        %v883 = vld.sshfl [vmem:[#allocation1 + $0x30] sm:$0xff pattern:$0x75316420]
        %v884 = vld.sshfl [vmem:[#allocation1 + $0x38] sm:$0xff pattern:$0x75316420]
        %885 = vst [vmem:[%s869] ss:$2 sm:$0xff] %v521
        %v886 = vld.sshfl [vmem:[#allocation1] sm:$0xff pattern:$0x75316420]
        %887 = vrot.lane.b32.xlu0 %v877, 61
        %v888 = vpop.permute.xlu0 %887
        %889 = vrot.lane.b32.xlu0 %v878, 61
        %v890 = vpop.permute.xlu0 %889
        %891 = vrot.lane.b32.xlu0 %v879, 61
        %v892 = vpop.permute.xlu0 %891
        %893 = vrot.lane.b32.xlu0 %v880, 61
        %v894 = vpop.permute.xlu0 %893
        %895 = vrot.lane.b32.xlu0 %v881, 61
        %v896 = vpop.permute.xlu0 %895
        %897 = vrot.lane.b32.xlu0 %v882, 61
        %v898 = vpop.permute.xlu0 %897
        %899 = vrot.lane.b32.xlu0 %v883, 61
        %v900 = vpop.permute.xlu0 %899
        %901 = vrot.lane.b32.xlu0 %v884, 61
        %v902 = vpop.permute.xlu0 %901
        %903 = vrot.lane.b32.xlu0 %v886, 61
        %v904 = vpop.permute.xlu0 %903
        %vm905 = vcmask 498688
        %v906 = vsel %vm905, %v888, %v890
        %v907 = vsel %vm905, %v890, %v892
        %v908 = vsel %vm905, %v892, %v894
        %v909 = vsel %vm905, %v894, %v896
        %v910 = vsel %vm905, %v896, %v898
        %v911 = vsel %vm905, %v898, %v900
        %v912 = vsel %vm905, %v900, %v902
        %v913 = vsel %vm905, %v902, %v904
        %922 = vst [vmem:[#allocation1] ss:$2 sm:$0xff] %v517
        %s923 = scalar_lea.vmem [#allocation1], 16
        %924 = vst [vmem:[%s923] ss:$2 sm:$0xff] %v518
        %s925 = scalar_lea.vmem [#allocation1], 32
        %926 = vst [vmem:[%s925] ss:$2 sm:$0xff] %v519
        %s927 = scalar_lea.vmem [#allocation1], 48
        %928 = vst [vmem:[%s927] ss:$2 sm:$0xff] %v520
        %v929 = vld.sshfl [vmem:[#allocation1] sm:$0xff pattern:$0x75316420]
        %v930 = vld.sshfl [vmem:[#allocation1 + $0x8] sm:$0xff pattern:$0x75316420]
        %v931 = vld.sshfl [vmem:[#allocation1 + $0x10] sm:$0xff pattern:$0x75316420]
        %v932 = vld.sshfl [vmem:[#allocation1 + $0x18] sm:$0xff pattern:$0x75316420]
        %v933 = vld.sshfl [vmem:[#allocation1 + $0x20] sm:$0xff pattern:$0x75316420]
        %v934 = vld.sshfl [vmem:[#allocation1 + $0x28] sm:$0xff pattern:$0x75316420]
        %v935 = vld.sshfl [vmem:[#allocation1 + $0x30] sm:$0xff pattern:$0x75316420]
        %v936 = vld.sshfl [vmem:[#allocation1 + $0x38] sm:$0xff pattern:$0x75316420]
        %937 = vst [vmem:[#allocation1] ss:$2 sm:$0xff] %v521
        %v938 = vld.sshfl [vmem:[#allocation1] sm:$0xff pattern:$0x75316420]
        %939 = vrot.lane.b32.xlu0 %v929, 60
        %v940 = vpop.permute.xlu0 %939
        %941 = vrot.lane.b32.xlu0 %v930, 60
        %v942 = vpop.permute.xlu0 %941
        %943 = vrot.lane.b32.xlu0 %v931, 60
        %v944 = vpop.permute.xlu0 %943
        %945 = vrot.lane.b32.xlu0 %v932, 60
        %v946 = vpop.permute.xlu0 %945
        %947 = vrot.lane.b32.xlu0 %v933, 60
        %v948 = vpop.permute.xlu0 %947
        %949 = vrot.lane.b32.xlu0 %v934, 60
        %v950 = vpop.permute.xlu0 %949
        %951 = vrot.lane.b32.xlu0 %v935, 60
        %v952 = vpop.permute.xlu0 %951
        %953 = vrot.lane.b32.xlu0 %v936, 60
        %v954 = vpop.permute.xlu0 %953
        %955 = vrot.lane.b32.xlu0 %v938, 60
        %v956 = vpop.permute.xlu0 %955
        %vm957 = vcmask 490496
        %v958 = vsel %vm957, %v940, %v942
        %v959 = vsel %vm957, %v942, %v944
        %v960 = vsel %vm957, %v944, %v946
        %v961 = vsel %vm957, %v946, %v948
        %v962 = vsel %vm957, %v948, %v950
        %v963 = vsel %vm957, %v950, %v952
        %v964 = vsel %vm957, %v952, %v954
        %v965 = vsel %vm957, %v954, %v956
        %vm966 = vcmask 1043456
        %v967 = vsel %vm966, %v533, %v591
        %v968 = vsel %vm966, %v534, %v592
        %v969 = vsel %vm966, %v535, %v593
        %v970 = vsel %vm966, %v536, %v594
        %v971 = vsel %vm966, %v537, %v595
        %v972 = vsel %vm966, %v538, %v596
        %v973 = vsel %vm966, %v539, %v597
        %v974 = vsel %vm966, %v540, %v598
        %v975 = vsel %vm966, %v643, %v696
        %v976 = vsel %vm966, %v644, %v697
        %v977 = vsel %vm966, %v645, %v698
        %v978 = vsel %vm966, %v646, %v699
        %v979 = vsel %vm966, %v647, %v700
        %v980 = vsel %vm966, %v648, %v701
        %v981 = vsel %vm966, %v649, %v702
        %v982 = vsel %vm966, %v650, %v703
        %v983 = vsel %vm966, %v748, %v801
        %v984 = vsel %vm966, %v749, %v802
        %v985 = vsel %vm966, %v750, %v803
        %v986 = vsel %vm966, %v751, %v804
        %v987 = vsel %vm966, %v752, %v805
        %v988 = vsel %vm966, %v753, %v806
        %v989 = vsel %vm966, %v754, %v807
        %v990 = vsel %vm966, %v755, %v808
        %v991 = vsel %vm966, %v853, %v906
        %v992 = vsel %vm966, %v854, %v907
        %v993 = vsel %vm966, %v855, %v908
        %v994 = vsel %vm966, %v856, %v909
        %v995 = vsel %vm966, %v857, %v910
        %v996 = vsel %vm966, %v858, %v911
        %v997 = vsel %vm966, %v859, %v912
        %v998 = vsel %vm966, %v860, %v913
        %vm999 = vcmask 293888
        %v1001 = vsel %vm999, %v512, 0
        %v1003 = vsel %vm966, %v958, 0
        %v1005 = vsel %vm966, %v959, 0
        %v1007 = vsel %vm966, %v960, 0
        %v1009 = vsel %vm966, %v961, 0
        %v1011 = vsel %vm966, %v962, 0
        %v1013 = vsel %vm966, %v963, 0
        %v1015 = vsel %vm966, %v964, 0
        %v1017 = vsel %vm966, %v965, 0
        %1019 = vmatpush.msra.mxu0 0.0
        %1020 = vmatpush.msra.mxu0 0.0
        %1021 = vmatpush.msra.mxu0 0.0
        %1022 = vmatpush.msra.mxu0 0.0
        %1023 = vmatpush.msra.mxu0 0.0
        %1024 = vmatpush.msra.mxu0 0.0
        %1025 = vmatpush.msra.mxu0 0.0
        %1026 = vmatpush.msra.mxu0 0.0
        %1027 = vmatpush.msra.mxu0 0.0
        %1028 = vmatpush.msra.mxu0 0.0
        %1029 = vmatpush.msra.mxu0 0.0
        %v1030 = vand.u32 %v1003, 4294901760
        %1031 = vmatpush.msra.mxu0 %v1030
        %v1032 = vand.u32 %v991, 4294901760
        %1033 = vmatpush.msra.mxu0 %v1032
        %v1034 = vand.u32 %v983, 4294901760
        %1035 = vmatpush.msra.mxu0 %v1034
        %v1036 = vand.u32 %v975, 4294901760
        %1037 = vmatpush.msra.mxu0 %v1036
        %v1038 = vand.u32 %v967, 4294901760
        %1039 = vmatpush.msra.mxu0 %v1038
        %v1040 = vand.u32 %v1001, 4294901760
        %v1041 = vsub.f32 %v1001, %v1040
        %v1042 = vand.u32 %v1041, 4294901760
        %v1043 = vsub.f32 %v1041, %v1042
        %v1044 = vand.u32 %v1043, 4294901760
        %1045 = vmatmul.f32.gmra.mxu0 %v1044
        %v1046 = vpop.f32.mrf.mxu0
        %v1047 = vadd.f32 0.0, %v1046
        %1048 = vdwg.mxu0
        %1049 = vmatpush.msra.mxu0 0.0
        %1050 = vmatpush.msra.mxu0 0.0
        %1051 = vmatpush.msra.mxu0 0.0
        %1052 = vmatpush.msra.mxu0 0.0
        %1053 = vmatpush.msra.mxu0 0.0
        %1054 = vmatpush.msra.mxu0 0.0
        %1055 = vmatpush.msra.mxu0 0.0
        %1056 = vmatpush.msra.mxu0 0.0
        %1057 = vmatpush.msra.mxu0 0.0
        %1058 = vmatpush.msra.mxu0 0.0
        %1059 = vmatpush.msra.mxu0 0.0
        %v1060 = vand.u32 %v1003, 4294901760
        %v1061 = vsub.f32 %v1003, %v1060
        %v1062 = vand.u32 %v1061, 4294901760
        %v1063 = vsub.f32 %v1061, %v1062
        %v1064 = vand.u32 %v1063, 4294901760
        %1065 = vmatpush.msra.mxu0 %v1064
        %v1066 = vand.u32 %v991, 4294901760
        %v1067 = vsub.f32 %v991, %v1066
        %v1068 = vand.u32 %v1067, 4294901760
        %v1069 = vsub.f32 %v1067, %v1068
        %v1070 = vand.u32 %v1069, 4294901760
        %1071 = vmatpush.msra.mxu0 %v1070
        %v1072 = vand.u32 %v983, 4294901760
        %v1073 = vsub.f32 %v983, %v1072
        %v1074 = vand.u32 %v1073, 4294901760
        %v1075 = vsub.f32 %v1073, %v1074
        %v1076 = vand.u32 %v1075, 4294901760
        %1077 = vmatpush.msra.mxu0 %v1076
        %v1078 = vand.u32 %v975, 4294901760
        %v1079 = vsub.f32 %v975, %v1078
        %v1080 = vand.u32 %v1079, 4294901760
        %v1081 = vsub.f32 %v1079, %v1080
        %v1082 = vand.u32 %v1081, 4294901760
        %1083 = vmatpush.msra.mxu0 %v1082
        %v1084 = vand.u32 %v967, 4294901760
        %v1085 = vsub.f32 %v967, %v1084
        %v1086 = vand.u32 %v1085, 4294901760
        %v1087 = vsub.f32 %v1085, %v1086
        %v1088 = vand.u32 %v1087, 4294901760
        %1089 = vmatpush.msra.mxu0 %v1088
        %v1090 = vand.u32 %v1001, 4294901760
        %1091 = vmatmul.f32.gmra.mxu0 %v1090
        %v1092 = vpop.f32.mrf.mxu0
        %v1093 = vadd.f32 %v1047, %v1092
        %1094 = vdwg.mxu0
        %1095 = vmatpush.msra.mxu0 0.0
        %1096 = vmatpush.msra.mxu0 0.0
        %1097 = vmatpush.msra.mxu0 0.0
        %1098 = vmatpush.msra.mxu0 0.0
        %1099 = vmatpush.msra.mxu0 0.0
        %1100 = vmatpush.msra.mxu0 0.0
        %1101 = vmatpush.msra.mxu0 0.0
        %1102 = vmatpush.msra.mxu0 0.0
        %1103 = vmatpush.msra.mxu0 0.0
        %1104 = vmatpush.msra.mxu0 0.0
        %1105 = vmatpush.msra.mxu0 0.0
        %v1106 = vand.u32 %v1003, 4294901760
        %v1107 = vsub.f32 %v1003, %v1106
        %1108 = vmatpush.msra.mxu0 %v1107
        %v1109 = vand.u32 %v991, 4294901760
        %v1110 = vsub.f32 %v991, %v1109
        %1111 = vmatpush.msra.mxu0 %v1110
        %v1112 = vand.u32 %v983, 4294901760
        %v1113 = vsub.f32 %v983, %v1112
        %1114 = vmatpush.msra.mxu0 %v1113
        %v1115 = vand.u32 %v975, 4294901760
        %v1116 = vsub.f32 %v975, %v1115
        %1117 = vmatpush.msra.mxu0 %v1116
        %v1118 = vand.u32 %v967, 4294901760
        %v1119 = vsub.f32 %v967, %v1118
        %1120 = vmatpush.msra.mxu0 %v1119
        %v1121 = vand.u32 %v1001, 4294901760
        %v1122 = vsub.f32 %v1001, %v1121
        %1123 = vmatmul.f32.gmra.mxu0 %v1122
        %v1124 = vpop.f32.mrf.mxu0
        %v1125 = vadd.f32 %v1093, %v1124
        %1126 = vdwg.mxu0
        %1127 = vmatpush.msra.mxu0 0.0
        %1128 = vmatpush.msra.mxu0 0.0
        %1129 = vmatpush.msra.mxu0 0.0
        %1130 = vmatpush.msra.mxu0 0.0
        %1131 = vmatpush.msra.mxu0 0.0
        %1132 = vmatpush.msra.mxu0 0.0
        %1133 = vmatpush.msra.mxu0 0.0
        %1134 = vmatpush.msra.mxu0 0.0
        %1135 = vmatpush.msra.mxu0 0.0
        %1136 = vmatpush.msra.mxu0 0.0
        %1137 = vmatpush.msra.mxu0 0.0
        %v1138 = vand.u32 %v1003, 4294901760
        %1139 = vmatpush.msra.mxu0 %v1138
        %v1140 = vand.u32 %v991, 4294901760
        %1141 = vmatpush.msra.mxu0 %v1140
        %v1142 = vand.u32 %v983, 4294901760
        %1143 = vmatpush.msra.mxu0 %v1142
        %v1144 = vand.u32 %v975, 4294901760
        %1145 = vmatpush.msra.mxu0 %v1144
        %v1146 = vand.u32 %v967, 4294901760
        %1147 = vmatpush.msra.mxu0 %v1146
        %v1148 = vand.u32 %v1001, 4294901760
        %v1149 = vsub.f32 %v1001, %v1148
        %v1150 = vand.u32 %v1149, 4294901760
        %1151 = vmatmul.f32.gmra.mxu0 %v1150
        %v1152 = vpop.f32.mrf.mxu0
        %v1153 = vadd.f32 %v1125, %v1152
        %1154 = vdwg.mxu0
        %1155 = vmatpush.msra.mxu0 0.0
        %1156 = vmatpush.msra.mxu0 0.0
        %1157 = vmatpush.msra.mxu0 0.0
        %1158 = vmatpush.msra.mxu0 0.0
        %1159 = vmatpush.msra.mxu0 0.0
        %1160 = vmatpush.msra.mxu0 0.0
        %1161 = vmatpush.msra.mxu0 0.0
        %1162 = vmatpush.msra.mxu0 0.0
        %1163 = vmatpush.msra.mxu0 0.0
        %1164 = vmatpush.msra.mxu0 0.0
        %1165 = vmatpush.msra.mxu0 0.0
        %v1166 = vand.u32 %v1003, 4294901760
        %v1167 = vsub.f32 %v1003, %v1166
        %v1168 = vand.u32 %v1167, 4294901760
        %1169 = vmatpush.msra.mxu0 %v1168
        %v1170 = vand.u32 %v991, 4294901760
        %v1171 = vsub.f32 %v991, %v1170
        %v1172 = vand.u32 %v1171, 4294901760
        %1173 = vmatpush.msra.mxu0 %v1172
        %v1174 = vand.u32 %v983, 4294901760
        %v1175 = vsub.f32 %v983, %v1174
        %v1176 = vand.u32 %v1175, 4294901760
        %1177 = vmatpush.msra.mxu0 %v1176
        %v1178 = vand.u32 %v975, 4294901760
        %v1179 = vsub.f32 %v975, %v1178
        %v1180 = vand.u32 %v1179, 4294901760
        %1181 = vmatpush.msra.mxu0 %v1180
        %v1182 = vand.u32 %v967, 4294901760
        %v1183 = vsub.f32 %v967, %v1182
        %v1184 = vand.u32 %v1183, 4294901760
        %1185 = vmatpush.msra.mxu0 %v1184
        %v1186 = vand.u32 %v1001, 4294901760
        %1187 = vmatmul.f32.gmra.mxu0 %v1186
        %v1188 = vpop.f32.mrf.mxu0
        %v1189 = vadd.f32 %v1153, %v1188
        %1190 = vdwg.mxu0
        %1191 = vmatpush.msra.mxu0 0.0
        %1192 = vmatpush.msra.mxu0 0.0
        %1193 = vmatpush.msra.mxu0 0.0
        %1194 = vmatpush.msra.mxu0 0.0
        %1195 = vmatpush.msra.mxu0 0.0
        %1196 = vmatpush.msra.mxu0 0.0
        %1197 = vmatpush.msra.mxu0 0.0
        %1198 = vmatpush.msra.mxu0 0.0
        %1199 = vmatpush.msra.mxu0 0.0
        %1200 = vmatpush.msra.mxu0 0.0
        %1201 = vmatpush.msra.mxu0 0.0
        %v1202 = vand.u32 %v1003, 4294901760
        %1203 = vmatpush.msra.mxu0 %v1202
        %v1204 = vand.u32 %v991, 4294901760
        %1205 = vmatpush.msra.mxu0 %v1204
        %v1206 = vand.u32 %v983, 4294901760
        %1207 = vmatpush.msra.mxu0 %v1206
        %v1208 = vand.u32 %v975, 4294901760
        %1209 = vmatpush.msra.mxu0 %v1208
        %v1210 = vand.u32 %v967, 4294901760
        %1211 = vmatpush.msra.mxu0 %v1210
        %v1212 = vand.u32 %v1001, 4294901760
        %1213 = vmatmul.f32.gmra.mxu0 %v1212
        %v1214 = vpop.f32.mrf.mxu0
        %v1215 = vadd.f32 %v1189, %v1214
        %1216 = vdwg.mxu0
        %1217 = vmatpush.msra.mxu0 0.0
        %1218 = vmatpush.msra.mxu0 0.0
        %1219 = vmatpush.msra.mxu0 0.0
        %1220 = vmatpush.msra.mxu0 0.0
        %1221 = vmatpush.msra.mxu0 0.0
        %1222 = vmatpush.msra.mxu0 0.0
        %1223 = vmatpush.msra.mxu0 0.0
        %1224 = vmatpush.msra.mxu0 0.0
        %1225 = vmatpush.msra.mxu0 0.0
        %1226 = vmatpush.msra.mxu0 0.0
        %1227 = vmatpush.msra.mxu0 0.0
        %v1228 = vand.u32 %v1005, 4294901760
        %1229 = vmatpush.msra.mxu0 %v1228
        %v1230 = vand.u32 %v992, 4294901760
        %1231 = vmatpush.msra.mxu0 %v1230
        %v1232 = vand.u32 %v984, 4294901760
        %1233 = vmatpush.msra.mxu0 %v1232
        %v1234 = vand.u32 %v976, 4294901760
        %1235 = vmatpush.msra.mxu0 %v1234
        %v1236 = vand.u32 %v968, 4294901760
        %1237 = vmatpush.msra.mxu0 %v1236
        %v1238 = vand.u32 %v1001, 4294901760
        %v1239 = vsub.f32 %v1001, %v1238
        %v1240 = vand.u32 %v1239, 4294901760
        %v1241 = vsub.f32 %v1239, %v1240
        %v1242 = vand.u32 %v1241, 4294901760
        %1243 = vmatmul.f32.gmra.mxu0 %v1242
        %v1244 = vpop.f32.mrf.mxu0
        %v1245 = vadd.f32 0.0, %v1244
        %1246 = vdwg.mxu0
        %1247 = vmatpush.msra.mxu0 0.0
        %1248 = vmatpush.msra.mxu0 0.0
        %1249 = vmatpush.msra.mxu0 0.0
        %1250 = vmatpush.msra.mxu0 0.0
        %1251 = vmatpush.msra.mxu0 0.0
        %1252 = vmatpush.msra.mxu0 0.0
        %1253 = vmatpush.msra.mxu0 0.0
        %1254 = vmatpush.msra.mxu0 0.0
        %1255 = vmatpush.msra.mxu0 0.0
        %1256 = vmatpush.msra.mxu0 0.0
        %1257 = vmatpush.msra.mxu0 0.0
        %v1258 = vand.u32 %v1005, 4294901760
        %v1259 = vsub.f32 %v1005, %v1258
        %v1260 = vand.u32 %v1259, 4294901760
        %v1261 = vsub.f32 %v1259, %v1260
        %v1262 = vand.u32 %v1261, 4294901760
        %1263 = vmatpush.msra.mxu0 %v1262
        %v1264 = vand.u32 %v992, 4294901760
        %v1265 = vsub.f32 %v992, %v1264
        %v1266 = vand.u32 %v1265, 4294901760
        %v1267 = vsub.f32 %v1265, %v1266
        %v1268 = vand.u32 %v1267, 4294901760
        %1269 = vmatpush.msra.mxu0 %v1268
        %v1270 = vand.u32 %v984, 4294901760
        %v1271 = vsub.f32 %v984, %v1270
        %v1272 = vand.u32 %v1271, 4294901760
        %v1273 = vsub.f32 %v1271, %v1272
        %v1274 = vand.u32 %v1273, 4294901760
        %1275 = vmatpush.msra.mxu0 %v1274
        %v1276 = vand.u32 %v976, 4294901760
        %v1277 = vsub.f32 %v976, %v1276
        %v1278 = vand.u32 %v1277, 4294901760
        %v1279 = vsub.f32 %v1277, %v1278
        %v1280 = vand.u32 %v1279, 4294901760
        %1281 = vmatpush.msra.mxu0 %v1280
        %v1282 = vand.u32 %v968, 4294901760
        %v1283 = vsub.f32 %v968, %v1282
        %v1284 = vand.u32 %v1283, 4294901760
        %v1285 = vsub.f32 %v1283, %v1284
        %v1286 = vand.u32 %v1285, 4294901760
        %1287 = vmatpush.msra.mxu0 %v1286
        %v1288 = vand.u32 %v1001, 4294901760
        %1289 = vmatmul.f32.gmra.mxu0 %v1288
        %v1290 = vpop.f32.mrf.mxu0
        %v1291 = vadd.f32 %v1245, %v1290
        %1292 = vdwg.mxu0
        %1293 = vmatpush.msra.mxu0 0.0
        %1294 = vmatpush.msra.mxu0 0.0
        %1295 = vmatpush.msra.mxu0 0.0
        %1296 = vmatpush.msra.mxu0 0.0
        %1297 = vmatpush.msra.mxu0 0.0
        %1298 = vmatpush.msra.mxu0 0.0
        %1299 = vmatpush.msra.mxu0 0.0
        %1300 = vmatpush.msra.mxu0 0.0
        %1301 = vmatpush.msra.mxu0 0.0
        %1302 = vmatpush.msra.mxu0 0.0
        %1303 = vmatpush.msra.mxu0 0.0
        %v1304 = vand.u32 %v1005, 4294901760
        %v1305 = vsub.f32 %v1005, %v1304
        %1306 = vmatpush.msra.mxu0 %v1305
        %v1307 = vand.u32 %v992, 4294901760
        %v1308 = vsub.f32 %v992, %v1307
        %1309 = vmatpush.msra.mxu0 %v1308
        %v1310 = vand.u32 %v984, 4294901760
        %v1311 = vsub.f32 %v984, %v1310
        %1312 = vmatpush.msra.mxu0 %v1311
        %v1313 = vand.u32 %v976, 4294901760
        %v1314 = vsub.f32 %v976, %v1313
        %1315 = vmatpush.msra.mxu0 %v1314
        %v1316 = vand.u32 %v968, 4294901760
        %v1317 = vsub.f32 %v968, %v1316
        %1318 = vmatpush.msra.mxu0 %v1317
        %v1319 = vand.u32 %v1001, 4294901760
        %v1320 = vsub.f32 %v1001, %v1319
        %1321 = vmatmul.f32.gmra.mxu0 %v1320
        %v1322 = vpop.f32.mrf.mxu0
        %v1323 = vadd.f32 %v1291, %v1322
        %1324 = vdwg.mxu0
        %1325 = vmatpush.msra.mxu0 0.0
        %1326 = vmatpush.msra.mxu0 0.0
        %1327 = vmatpush.msra.mxu0 0.0
        %1328 = vmatpush.msra.mxu0 0.0
        %1329 = vmatpush.msra.mxu0 0.0
        %1330 = vmatpush.msra.mxu0 0.0
        %1331 = vmatpush.msra.mxu0 0.0
        %1332 = vmatpush.msra.mxu0 0.0
        %1333 = vmatpush.msra.mxu0 0.0
        %1334 = vmatpush.msra.mxu0 0.0
        %1335 = vmatpush.msra.mxu0 0.0
        %v1336 = vand.u32 %v1005, 4294901760
        %1337 = vmatpush.msra.mxu0 %v1336
        %v1338 = vand.u32 %v992, 4294901760
        %1339 = vmatpush.msra.mxu0 %v1338
        %v1340 = vand.u32 %v984, 4294901760
        %1341 = vmatpush.msra.mxu0 %v1340
        %v1342 = vand.u32 %v976, 4294901760
        %1343 = vmatpush.msra.mxu0 %v1342
        %v1344 = vand.u32 %v968, 4294901760
        %1345 = vmatpush.msra.mxu0 %v1344
        %v1346 = vand.u32 %v1001, 4294901760
        %v1347 = vsub.f32 %v1001, %v1346
        %v1348 = vand.u32 %v1347, 4294901760
        %1349 = vmatmul.f32.gmra.mxu0 %v1348
        %v1350 = vpop.f32.mrf.mxu0
        %v1351 = vadd.f32 %v1323, %v1350
        %1352 = vdwg.mxu0
        %1353 = vmatpush.msra.mxu0 0.0
        %1354 = vmatpush.msra.mxu0 0.0
        %1355 = vmatpush.msra.mxu0 0.0
        %1356 = vmatpush.msra.mxu0 0.0
        %1357 = vmatpush.msra.mxu0 0.0
        %1358 = vmatpush.msra.mxu0 0.0
        %1359 = vmatpush.msra.mxu0 0.0
        %1360 = vmatpush.msra.mxu0 0.0
        %1361 = vmatpush.msra.mxu0 0.0
        %1362 = vmatpush.msra.mxu0 0.0
        %1363 = vmatpush.msra.mxu0 0.0
        %v1364 = vand.u32 %v1005, 4294901760
        %v1365 = vsub.f32 %v1005, %v1364
        %v1366 = vand.u32 %v1365, 4294901760
        %1367 = vmatpush.msra.mxu0 %v1366
        %v1368 = vand.u32 %v992, 4294901760
        %v1369 = vsub.f32 %v992, %v1368
        %v1370 = vand.u32 %v1369, 4294901760
        %1371 = vmatpush.msra.mxu0 %v1370
        %v1372 = vand.u32 %v984, 4294901760
        %v1373 = vsub.f32 %v984, %v1372
        %v1374 = vand.u32 %v1373, 4294901760
        %1375 = vmatpush.msra.mxu0 %v1374
        %v1376 = vand.u32 %v976, 4294901760
        %v1377 = vsub.f32 %v976, %v1376
        %v1378 = vand.u32 %v1377, 4294901760
        %1379 = vmatpush.msra.mxu0 %v1378
        %v1380 = vand.u32 %v968, 4294901760
        %v1381 = vsub.f32 %v968, %v1380
        %v1382 = vand.u32 %v1381, 4294901760
        %1383 = vmatpush.msra.mxu0 %v1382
        %v1384 = vand.u32 %v1001, 4294901760
        %1385 = vmatmul.f32.gmra.mxu0 %v1384
        %v1386 = vpop.f32.mrf.mxu0
        %v1387 = vadd.f32 %v1351, %v1386
        %1388 = vdwg.mxu0
        %1389 = vmatpush.msra.mxu0 0.0
        %1390 = vmatpush.msra.mxu0 0.0
        %1391 = vmatpush.msra.mxu0 0.0
        %1392 = vmatpush.msra.mxu0 0.0
        %1393 = vmatpush.msra.mxu0 0.0
        %1394 = vmatpush.msra.mxu0 0.0
        %1395 = vmatpush.msra.mxu0 0.0
        %1396 = vmatpush.msra.mxu0 0.0
        %1397 = vmatpush.msra.mxu0 0.0
        %1398 = vmatpush.msra.mxu0 0.0
        %1399 = vmatpush.msra.mxu0 0.0
        %v1400 = vand.u32 %v1005, 4294901760
        %1401 = vmatpush.msra.mxu0 %v1400
        %v1402 = vand.u32 %v992, 4294901760
        %1403 = vmatpush.msra.mxu0 %v1402
        %v1404 = vand.u32 %v984, 4294901760
        %1405 = vmatpush.msra.mxu0 %v1404
        %v1406 = vand.u32 %v976, 4294901760
        %1407 = vmatpush.msra.mxu0 %v1406
        %v1408 = vand.u32 %v968, 4294901760
        %1409 = vmatpush.msra.mxu0 %v1408
        %v1410 = vand.u32 %v1001, 4294901760
        %1411 = vmatmul.f32.gmra.mxu0 %v1410
        %v1412 = vpop.f32.mrf.mxu0
        %v1413 = vadd.f32 %v1387, %v1412
        %1414 = vdwg.mxu0
        %1415 = vmatpush.msra.mxu0 0.0
        %1416 = vmatpush.msra.mxu0 0.0
        %1417 = vmatpush.msra.mxu0 0.0
        %1418 = vmatpush.msra.mxu0 0.0
        %1419 = vmatpush.msra.mxu0 0.0
        %1420 = vmatpush.msra.mxu0 0.0
        %1421 = vmatpush.msra.mxu0 0.0
        %1422 = vmatpush.msra.mxu0 0.0
        %1423 = vmatpush.msra.mxu0 0.0
        %1424 = vmatpush.msra.mxu0 0.0
        %1425 = vmatpush.msra.mxu0 0.0
        %v1426 = vand.u32 %v1007, 4294901760
        %1427 = vmatpush.msra.mxu0 %v1426
        %v1428 = vand.u32 %v993, 4294901760
        %1429 = vmatpush.msra.mxu0 %v1428
        %v1430 = vand.u32 %v985, 4294901760
        %1431 = vmatpush.msra.mxu0 %v1430
        %v1432 = vand.u32 %v977, 4294901760
        %1433 = vmatpush.msra.mxu0 %v1432
        %v1434 = vand.u32 %v969, 4294901760
        %1435 = vmatpush.msra.mxu0 %v1434
        %v1436 = vand.u32 %v1001, 4294901760
        %v1437 = vsub.f32 %v1001, %v1436
        %v1438 = vand.u32 %v1437, 4294901760
        %v1439 = vsub.f32 %v1437, %v1438
        %v1440 = vand.u32 %v1439, 4294901760
        %1441 = vmatmul.f32.gmra.mxu0 %v1440
        %v1442 = vpop.f32.mrf.mxu0
        %v1443 = vadd.f32 0.0, %v1442
        %1444 = vdwg.mxu0
        %1445 = vmatpush.msra.mxu0 0.0
        %1446 = vmatpush.msra.mxu0 0.0
        %1447 = vmatpush.msra.mxu0 0.0
        %1448 = vmatpush.msra.mxu0 0.0
        %1449 = vmatpush.msra.mxu0 0.0
        %1450 = vmatpush.msra.mxu0 0.0
        %1451 = vmatpush.msra.mxu0 0.0
        %1452 = vmatpush.msra.mxu0 0.0
        %1453 = vmatpush.msra.mxu0 0.0
        %1454 = vmatpush.msra.mxu0 0.0
        %1455 = vmatpush.msra.mxu0 0.0
        %v1456 = vand.u32 %v1007, 4294901760
        %v1457 = vsub.f32 %v1007, %v1456
        %v1458 = vand.u32 %v1457, 4294901760
        %v1459 = vsub.f32 %v1457, %v1458
        %v1460 = vand.u32 %v1459, 4294901760
        %1461 = vmatpush.msra.mxu0 %v1460
        %v1462 = vand.u32 %v993, 4294901760
        %v1463 = vsub.f32 %v993, %v1462
        %v1464 = vand.u32 %v1463, 4294901760
        %v1465 = vsub.f32 %v1463, %v1464
        %v1466 = vand.u32 %v1465, 4294901760
        %1467 = vmatpush.msra.mxu0 %v1466
        %v1468 = vand.u32 %v985, 4294901760
        %v1469 = vsub.f32 %v985, %v1468
        %v1470 = vand.u32 %v1469, 4294901760
        %v1471 = vsub.f32 %v1469, %v1470
        %v1472 = vand.u32 %v1471, 4294901760
        %1473 = vmatpush.msra.mxu0 %v1472
        %v1474 = vand.u32 %v977, 4294901760
        %v1475 = vsub.f32 %v977, %v1474
        %v1476 = vand.u32 %v1475, 4294901760
        %v1477 = vsub.f32 %v1475, %v1476
        %v1478 = vand.u32 %v1477, 4294901760
        %1479 = vmatpush.msra.mxu0 %v1478
        %v1480 = vand.u32 %v969, 4294901760
        %v1481 = vsub.f32 %v969, %v1480
        %v1482 = vand.u32 %v1481, 4294901760
        %v1483 = vsub.f32 %v1481, %v1482
        %v1484 = vand.u32 %v1483, 4294901760
        %1485 = vmatpush.msra.mxu0 %v1484
        %v1486 = vand.u32 %v1001, 4294901760
        %1487 = vmatmul.f32.gmra.mxu0 %v1486
        %v1488 = vpop.f32.mrf.mxu0
        %v1489 = vadd.f32 %v1443, %v1488
        %1490 = vdwg.mxu0
        %1491 = vmatpush.msra.mxu0 0.0
        %1492 = vmatpush.msra.mxu0 0.0
        %1493 = vmatpush.msra.mxu0 0.0
        %1494 = vmatpush.msra.mxu0 0.0
        %1495 = vmatpush.msra.mxu0 0.0
        %1496 = vmatpush.msra.mxu0 0.0
        %1497 = vmatpush.msra.mxu0 0.0
        %1498 = vmatpush.msra.mxu0 0.0
        %1499 = vmatpush.msra.mxu0 0.0
        %1500 = vmatpush.msra.mxu0 0.0
        %1501 = vmatpush.msra.mxu0 0.0
        %v1502 = vand.u32 %v1007, 4294901760
        %v1503 = vsub.f32 %v1007, %v1502
        %1504 = vmatpush.msra.mxu0 %v1503
        %v1505 = vand.u32 %v993, 4294901760
        %v1506 = vsub.f32 %v993, %v1505
        %1507 = vmatpush.msra.mxu0 %v1506
        %v1508 = vand.u32 %v985, 4294901760
        %v1509 = vsub.f32 %v985, %v1508
        %1510 = vmatpush.msra.mxu0 %v1509
        %v1511 = vand.u32 %v977, 4294901760
        %v1512 = vsub.f32 %v977, %v1511
        %1513 = vmatpush.msra.mxu0 %v1512
        %v1514 = vand.u32 %v969, 4294901760
        %v1515 = vsub.f32 %v969, %v1514
        %1516 = vmatpush.msra.mxu0 %v1515
        %v1517 = vand.u32 %v1001, 4294901760
        %v1518 = vsub.f32 %v1001, %v1517
        %1519 = vmatmul.f32.gmra.mxu0 %v1518
        %v1520 = vpop.f32.mrf.mxu0
        %v1521 = vadd.f32 %v1489, %v1520
        %1522 = vdwg.mxu0
        %1523 = vmatpush.msra.mxu0 0.0
        %1524 = vmatpush.msra.mxu0 0.0
        %1525 = vmatpush.msra.mxu0 0.0
        %1526 = vmatpush.msra.mxu0 0.0
        %1527 = vmatpush.msra.mxu0 0.0
        %1528 = vmatpush.msra.mxu0 0.0
        %1529 = vmatpush.msra.mxu0 0.0
        %1530 = vmatpush.msra.mxu0 0.0
        %1531 = vmatpush.msra.mxu0 0.0
        %1532 = vmatpush.msra.mxu0 0.0
        %1533 = vmatpush.msra.mxu0 0.0
        %v1534 = vand.u32 %v1007, 4294901760
        %1535 = vmatpush.msra.mxu0 %v1534
        %v1536 = vand.u32 %v993, 4294901760
        %1537 = vmatpush.msra.mxu0 %v1536
        %v1538 = vand.u32 %v985, 4294901760
        %1539 = vmatpush.msra.mxu0 %v1538
        %v1540 = vand.u32 %v977, 4294901760
        %1541 = vmatpush.msra.mxu0 %v1540
        %v1542 = vand.u32 %v969, 4294901760
        %1543 = vmatpush.msra.mxu0 %v1542
        %v1544 = vand.u32 %v1001, 4294901760
        %v1545 = vsub.f32 %v1001, %v1544
        %v1546 = vand.u32 %v1545, 4294901760
        %1547 = vmatmul.f32.gmra.mxu0 %v1546
        %v1548 = vpop.f32.mrf.mxu0
        %v1549 = vadd.f32 %v1521, %v1548
        %1550 = vdwg.mxu0
        %1551 = vmatpush.msra.mxu0 0.0
        %1552 = vmatpush.msra.mxu0 0.0
        %1553 = vmatpush.msra.mxu0 0.0
        %1554 = vmatpush.msra.mxu0 0.0
        %1555 = vmatpush.msra.mxu0 0.0
        %1556 = vmatpush.msra.mxu0 0.0
        %1557 = vmatpush.msra.mxu0 0.0
        %1558 = vmatpush.msra.mxu0 0.0
        %1559 = vmatpush.msra.mxu0 0.0
        %1560 = vmatpush.msra.mxu0 0.0
        %1561 = vmatpush.msra.mxu0 0.0
        %v1562 = vand.u32 %v1007, 4294901760
        %v1563 = vsub.f32 %v1007, %v1562
        %v1564 = vand.u32 %v1563, 4294901760
        %1565 = vmatpush.msra.mxu0 %v1564
        %v1566 = vand.u32 %v993, 4294901760
        %v1567 = vsub.f32 %v993, %v1566
        %v1568 = vand.u32 %v1567, 4294901760
        %1569 = vmatpush.msra.mxu0 %v1568
        %v1570 = vand.u32 %v985, 4294901760
        %v1571 = vsub.f32 %v985, %v1570
        %v1572 = vand.u32 %v1571, 4294901760
        %1573 = vmatpush.msra.mxu0 %v1572
        %v1574 = vand.u32 %v977, 4294901760
        %v1575 = vsub.f32 %v977, %v1574
        %v1576 = vand.u32 %v1575, 4294901760
        %1577 = vmatpush.msra.mxu0 %v1576
        %v1578 = vand.u32 %v969, 4294901760
        %v1579 = vsub.f32 %v969, %v1578
        %v1580 = vand.u32 %v1579, 4294901760
        %1581 = vmatpush.msra.mxu0 %v1580
        %v1582 = vand.u32 %v1001, 4294901760
        %1583 = vmatmul.f32.gmra.mxu0 %v1582
        %v1584 = vpop.f32.mrf.mxu0
        %v1585 = vadd.f32 %v1549, %v1584
        %1586 = vdwg.mxu0
        %1587 = vmatpush.msra.mxu0 0.0
        %1588 = vmatpush.msra.mxu0 0.0
        %1589 = vmatpush.msra.mxu0 0.0
        %1590 = vmatpush.msra.mxu0 0.0
        %1591 = vmatpush.msra.mxu0 0.0
        %1592 = vmatpush.msra.mxu0 0.0
        %1593 = vmatpush.msra.mxu0 0.0
        %1594 = vmatpush.msra.mxu0 0.0
        %1595 = vmatpush.msra.mxu0 0.0
        %1596 = vmatpush.msra.mxu0 0.0
        %1597 = vmatpush.msra.mxu0 0.0
        %v1598 = vand.u32 %v1007, 4294901760
        %1599 = vmatpush.msra.mxu0 %v1598
        %v1600 = vand.u32 %v993, 4294901760
        %1601 = vmatpush.msra.mxu0 %v1600
        %v1602 = vand.u32 %v985, 4294901760
        %1603 = vmatpush.msra.mxu0 %v1602
        %v1604 = vand.u32 %v977, 4294901760
        %1605 = vmatpush.msra.mxu0 %v1604
        %v1606 = vand.u32 %v969, 4294901760
        %1607 = vmatpush.msra.mxu0 %v1606
        %v1608 = vand.u32 %v1001, 4294901760
        %1609 = vmatmul.f32.gmra.mxu0 %v1608
        %v1610 = vpop.f32.mrf.mxu0
        %v1611 = vadd.f32 %v1585, %v1610
        %1612 = vdwg.mxu0
        %1613 = vmatpush.msra.mxu0 0.0
        %1614 = vmatpush.msra.mxu0 0.0
        %1615 = vmatpush.msra.mxu0 0.0
        %1616 = vmatpush.msra.mxu0 0.0
        %1617 = vmatpush.msra.mxu0 0.0
        %1618 = vmatpush.msra.mxu0 0.0
        %1619 = vmatpush.msra.mxu0 0.0
        %1620 = vmatpush.msra.mxu0 0.0
        %1621 = vmatpush.msra.mxu0 0.0
        %1622 = vmatpush.msra.mxu0 0.0
        %1623 = vmatpush.msra.mxu0 0.0
        %v1624 = vand.u32 %v1009, 4294901760
        %1625 = vmatpush.msra.mxu0 %v1624
        %v1626 = vand.u32 %v994, 4294901760
        %1627 = vmatpush.msra.mxu0 %v1626
        %v1628 = vand.u32 %v986, 4294901760
        %1629 = vmatpush.msra.mxu0 %v1628
        %v1630 = vand.u32 %v978, 4294901760
        %1631 = vmatpush.msra.mxu0 %v1630
        %v1632 = vand.u32 %v970, 4294901760
        %1633 = vmatpush.msra.mxu0 %v1632
        %v1634 = vand.u32 %v1001, 4294901760
        %v1635 = vsub.f32 %v1001, %v1634
        %v1636 = vand.u32 %v1635, 4294901760
        %v1637 = vsub.f32 %v1635, %v1636
        %v1638 = vand.u32 %v1637, 4294901760
        %1639 = vmatmul.f32.gmra.mxu0 %v1638
        %v1640 = vpop.f32.mrf.mxu0
        %v1641 = vadd.f32 0.0, %v1640
        %1642 = vdwg.mxu0
        %1643 = vmatpush.msra.mxu0 0.0
        %1644 = vmatpush.msra.mxu0 0.0
        %1645 = vmatpush.msra.mxu0 0.0
        %1646 = vmatpush.msra.mxu0 0.0
        %1647 = vmatpush.msra.mxu0 0.0
        %1648 = vmatpush.msra.mxu0 0.0
        %1649 = vmatpush.msra.mxu0 0.0
        %1650 = vmatpush.msra.mxu0 0.0
        %1651 = vmatpush.msra.mxu0 0.0
        %1652 = vmatpush.msra.mxu0 0.0
        %1653 = vmatpush.msra.mxu0 0.0
        %v1654 = vand.u32 %v1009, 4294901760
        %v1655 = vsub.f32 %v1009, %v1654
        %v1656 = vand.u32 %v1655, 4294901760
        %v1657 = vsub.f32 %v1655, %v1656
        %v1658 = vand.u32 %v1657, 4294901760
        %1659 = vmatpush.msra.mxu0 %v1658
        %v1660 = vand.u32 %v994, 4294901760
        %v1661 = vsub.f32 %v994, %v1660
        %v1662 = vand.u32 %v1661, 4294901760
        %v1663 = vsub.f32 %v1661, %v1662
        %v1664 = vand.u32 %v1663, 4294901760
        %1665 = vmatpush.msra.mxu0 %v1664
        %v1666 = vand.u32 %v986, 4294901760
        %v1667 = vsub.f32 %v986, %v1666
        %v1668 = vand.u32 %v1667, 4294901760
        %v1669 = vsub.f32 %v1667, %v1668
        %v1670 = vand.u32 %v1669, 4294901760
        %1671 = vmatpush.msra.mxu0 %v1670
        %v1672 = vand.u32 %v978, 4294901760
        %v1673 = vsub.f32 %v978, %v1672
        %v1674 = vand.u32 %v1673, 4294901760
        %v1675 = vsub.f32 %v1673, %v1674
        %v1676 = vand.u32 %v1675, 4294901760
        %1677 = vmatpush.msra.mxu0 %v1676
        %v1678 = vand.u32 %v970, 4294901760
        %v1679 = vsub.f32 %v970, %v1678
        %v1680 = vand.u32 %v1679, 4294901760
        %v1681 = vsub.f32 %v1679, %v1680
        %v1682 = vand.u32 %v1681, 4294901760
        %1683 = vmatpush.msra.mxu0 %v1682
        %v1684 = vand.u32 %v1001, 4294901760
        %1685 = vmatmul.f32.gmra.mxu0 %v1684
        %v1686 = vpop.f32.mrf.mxu0
        %v1687 = vadd.f32 %v1641, %v1686
        %1688 = vdwg.mxu0
        %1689 = vmatpush.msra.mxu0 0.0
        %1690 = vmatpush.msra.mxu0 0.0
        %1691 = vmatpush.msra.mxu0 0.0
        %1692 = vmatpush.msra.mxu0 0.0
        %1693 = vmatpush.msra.mxu0 0.0
        %1694 = vmatpush.msra.mxu0 0.0
        %1695 = vmatpush.msra.mxu0 0.0
        %1696 = vmatpush.msra.mxu0 0.0
        %1697 = vmatpush.msra.mxu0 0.0
        %1698 = vmatpush.msra.mxu0 0.0
        %1699 = vmatpush.msra.mxu0 0.0
        %v1700 = vand.u32 %v1009, 4294901760
        %v1701 = vsub.f32 %v1009, %v1700
        %1702 = vmatpush.msra.mxu0 %v1701
        %v1703 = vand.u32 %v994, 4294901760
        %v1704 = vsub.f32 %v994, %v1703
        %1705 = vmatpush.msra.mxu0 %v1704
        %v1706 = vand.u32 %v986, 4294901760
        %v1707 = vsub.f32 %v986, %v1706
        %1708 = vmatpush.msra.mxu0 %v1707
        %v1709 = vand.u32 %v978, 4294901760
        %v1710 = vsub.f32 %v978, %v1709
        %1711 = vmatpush.msra.mxu0 %v1710
        %v1712 = vand.u32 %v970, 4294901760
        %v1713 = vsub.f32 %v970, %v1712
        %1714 = vmatpush.msra.mxu0 %v1713
        %v1715 = vand.u32 %v1001, 4294901760
        %v1716 = vsub.f32 %v1001, %v1715
        %1717 = vmatmul.f32.gmra.mxu0 %v1716
        %v1718 = vpop.f32.mrf.mxu0
        %v1719 = vadd.f32 %v1687, %v1718
        %1720 = vdwg.mxu0
        %1721 = vmatpush.msra.mxu0 0.0
        %1722 = vmatpush.msra.mxu0 0.0
        %1723 = vmatpush.msra.mxu0 0.0
        %1724 = vmatpush.msra.mxu0 0.0
        %1725 = vmatpush.msra.mxu0 0.0
        %1726 = vmatpush.msra.mxu0 0.0
        %1727 = vmatpush.msra.mxu0 0.0
        %1728 = vmatpush.msra.mxu0 0.0
        %1729 = vmatpush.msra.mxu0 0.0
        %1730 = vmatpush.msra.mxu0 0.0
        %1731 = vmatpush.msra.mxu0 0.0
        %v1732 = vand.u32 %v1009, 4294901760
        %1733 = vmatpush.msra.mxu0 %v1732
        %v1734 = vand.u32 %v994, 4294901760
        %1735 = vmatpush.msra.mxu0 %v1734
        %v1736 = vand.u32 %v986, 4294901760
        %1737 = vmatpush.msra.mxu0 %v1736
        %v1738 = vand.u32 %v978, 4294901760
        %1739 = vmatpush.msra.mxu0 %v1738
        %v1740 = vand.u32 %v970, 4294901760
        %1741 = vmatpush.msra.mxu0 %v1740
        %v1742 = vand.u32 %v1001, 4294901760
        %v1743 = vsub.f32 %v1001, %v1742
        %v1744 = vand.u32 %v1743, 4294901760
        %1745 = vmatmul.f32.gmra.mxu0 %v1744
        %v1746 = vpop.f32.mrf.mxu0
        %v1747 = vadd.f32 %v1719, %v1746
        %1748 = vdwg.mxu0
        %1749 = vmatpush.msra.mxu0 0.0
        %1750 = vmatpush.msra.mxu0 0.0
        %1751 = vmatpush.msra.mxu0 0.0
        %1752 = vmatpush.msra.mxu0 0.0
        %1753 = vmatpush.msra.mxu0 0.0
        %1754 = vmatpush.msra.mxu0 0.0
        %1755 = vmatpush.msra.mxu0 0.0
        %1756 = vmatpush.msra.mxu0 0.0
        %1757 = vmatpush.msra.mxu0 0.0
        %1758 = vmatpush.msra.mxu0 0.0
        %1759 = vmatpush.msra.mxu0 0.0
        %v1760 = vand.u32 %v1009, 4294901760
        %v1761 = vsub.f32 %v1009, %v1760
        %v1762 = vand.u32 %v1761, 4294901760
        %1763 = vmatpush.msra.mxu0 %v1762
        %v1764 = vand.u32 %v994, 4294901760
        %v1765 = vsub.f32 %v994, %v1764
        %v1766 = vand.u32 %v1765, 4294901760
        %1767 = vmatpush.msra.mxu0 %v1766
        %v1768 = vand.u32 %v986, 4294901760
        %v1769 = vsub.f32 %v986, %v1768
        %v1770 = vand.u32 %v1769, 4294901760
        %1771 = vmatpush.msra.mxu0 %v1770
        %v1772 = vand.u32 %v978, 4294901760
        %v1773 = vsub.f32 %v978, %v1772
        %v1774 = vand.u32 %v1773, 4294901760
        %1775 = vmatpush.msra.mxu0 %v1774
        %v1776 = vand.u32 %v970, 4294901760
        %v1777 = vsub.f32 %v970, %v1776
        %v1778 = vand.u32 %v1777, 4294901760
        %1779 = vmatpush.msra.mxu0 %v1778
        %v1780 = vand.u32 %v1001, 4294901760
        %1781 = vmatmul.f32.gmra.mxu0 %v1780
        %v1782 = vpop.f32.mrf.mxu0
        %v1783 = vadd.f32 %v1747, %v1782
        %1784 = vdwg.mxu0
        %1785 = vmatpush.msra.mxu0 0.0
        %1786 = vmatpush.msra.mxu0 0.0
        %1787 = vmatpush.msra.mxu0 0.0
        %1788 = vmatpush.msra.mxu0 0.0
        %1789 = vmatpush.msra.mxu0 0.0
        %1790 = vmatpush.msra.mxu0 0.0
        %1791 = vmatpush.msra.mxu0 0.0
        %1792 = vmatpush.msra.mxu0 0.0
        %1793 = vmatpush.msra.mxu0 0.0
        %1794 = vmatpush.msra.mxu0 0.0
        %1795 = vmatpush.msra.mxu0 0.0
        %v1796 = vand.u32 %v1009, 4294901760
        %1797 = vmatpush.msra.mxu0 %v1796
        %v1798 = vand.u32 %v994, 4294901760
        %1799 = vmatpush.msra.mxu0 %v1798
        %v1800 = vand.u32 %v986, 4294901760
        %1801 = vmatpush.msra.mxu0 %v1800
        %v1802 = vand.u32 %v978, 4294901760
        %1803 = vmatpush.msra.mxu0 %v1802
        %v1804 = vand.u32 %v970, 4294901760
        %1805 = vmatpush.msra.mxu0 %v1804
        %v1806 = vand.u32 %v1001, 4294901760
        %1807 = vmatmul.f32.gmra.mxu0 %v1806
        %v1808 = vpop.f32.mrf.mxu0
        %v1809 = vadd.f32 %v1783, %v1808
        %1810 = vdwg.mxu0
        %1811 = vmatpush.msra.mxu0 0.0
        %1812 = vmatpush.msra.mxu0 0.0
        %1813 = vmatpush.msra.mxu0 0.0
        %1814 = vmatpush.msra.mxu0 0.0
        %1815 = vmatpush.msra.mxu0 0.0
        %1816 = vmatpush.msra.mxu0 0.0
        %1817 = vmatpush.msra.mxu0 0.0
        %1818 = vmatpush.msra.mxu0 0.0
        %1819 = vmatpush.msra.mxu0 0.0
        %1820 = vmatpush.msra.mxu0 0.0
        %1821 = vmatpush.msra.mxu0 0.0
        %v1822 = vand.u32 %v1011, 4294901760
        %1823 = vmatpush.msra.mxu0 %v1822
        %v1824 = vand.u32 %v995, 4294901760
        %1825 = vmatpush.msra.mxu0 %v1824
        %v1826 = vand.u32 %v987, 4294901760
        %1827 = vmatpush.msra.mxu0 %v1826
        %v1828 = vand.u32 %v979, 4294901760
        %1829 = vmatpush.msra.mxu0 %v1828
        %v1830 = vand.u32 %v971, 4294901760
        %1831 = vmatpush.msra.mxu0 %v1830
        %v1832 = vand.u32 %v1001, 4294901760
        %v1833 = vsub.f32 %v1001, %v1832
        %v1834 = vand.u32 %v1833, 4294901760
        %v1835 = vsub.f32 %v1833, %v1834
        %v1836 = vand.u32 %v1835, 4294901760
        %1837 = vmatmul.f32.gmra.mxu0 %v1836
        %v1838 = vpop.f32.mrf.mxu0
        %v1839 = vadd.f32 0.0, %v1838
        %1840 = vdwg.mxu0
        %1841 = vmatpush.msra.mxu0 0.0
        %1842 = vmatpush.msra.mxu0 0.0
        %1843 = vmatpush.msra.mxu0 0.0
        %1844 = vmatpush.msra.mxu0 0.0
        %1845 = vmatpush.msra.mxu0 0.0
        %1846 = vmatpush.msra.mxu0 0.0
        %1847 = vmatpush.msra.mxu0 0.0
        %1848 = vmatpush.msra.mxu0 0.0
        %1849 = vmatpush.msra.mxu0 0.0
        %1850 = vmatpush.msra.mxu0 0.0
        %1851 = vmatpush.msra.mxu0 0.0
        %v1852 = vand.u32 %v1011, 4294901760
        %v1853 = vsub.f32 %v1011, %v1852
        %v1854 = vand.u32 %v1853, 4294901760
        %v1855 = vsub.f32 %v1853, %v1854
        %v1856 = vand.u32 %v1855, 4294901760
        %1857 = vmatpush.msra.mxu0 %v1856
        %v1858 = vand.u32 %v995, 4294901760
        %v1859 = vsub.f32 %v995, %v1858
        %v1860 = vand.u32 %v1859, 4294901760
        %v1861 = vsub.f32 %v1859, %v1860
        %v1862 = vand.u32 %v1861, 4294901760
        %1863 = vmatpush.msra.mxu0 %v1862
        %v1864 = vand.u32 %v987, 4294901760
        %v1865 = vsub.f32 %v987, %v1864
        %v1866 = vand.u32 %v1865, 4294901760
        %v1867 = vsub.f32 %v1865, %v1866
        %v1868 = vand.u32 %v1867, 4294901760
        %1869 = vmatpush.msra.mxu0 %v1868
        %v1870 = vand.u32 %v979, 4294901760
        %v1871 = vsub.f32 %v979, %v1870
        %v1872 = vand.u32 %v1871, 4294901760
        %v1873 = vsub.f32 %v1871, %v1872
        %v1874 = vand.u32 %v1873, 4294901760
        %1875 = vmatpush.msra.mxu0 %v1874
        %v1876 = vand.u32 %v971, 4294901760
        %v1877 = vsub.f32 %v971, %v1876
        %v1878 = vand.u32 %v1877, 4294901760
        %v1879 = vsub.f32 %v1877, %v1878
        %v1880 = vand.u32 %v1879, 4294901760
        %1881 = vmatpush.msra.mxu0 %v1880
        %v1882 = vand.u32 %v1001, 4294901760
        %1883 = vmatmul.f32.gmra.mxu0 %v1882
        %v1884 = vpop.f32.mrf.mxu0
        %v1885 = vadd.f32 %v1839, %v1884
        %1886 = vdwg.mxu0
        %1887 = vmatpush.msra.mxu0 0.0
        %1888 = vmatpush.msra.mxu0 0.0
        %1889 = vmatpush.msra.mxu0 0.0
        %1890 = vmatpush.msra.mxu0 0.0
        %1891 = vmatpush.msra.mxu0 0.0
        %1892 = vmatpush.msra.mxu0 0.0
        %1893 = vmatpush.msra.mxu0 0.0
        %1894 = vmatpush.msra.mxu0 0.0
        %1895 = vmatpush.msra.mxu0 0.0
        %1896 = vmatpush.msra.mxu0 0.0
        %1897 = vmatpush.msra.mxu0 0.0
        %v1898 = vand.u32 %v1011, 4294901760
        %v1899 = vsub.f32 %v1011, %v1898
        %1900 = vmatpush.msra.mxu0 %v1899
        %v1901 = vand.u32 %v995, 4294901760
        %v1902 = vsub.f32 %v995, %v1901
        %1903 = vmatpush.msra.mxu0 %v1902
        %v1904 = vand.u32 %v987, 4294901760
        %v1905 = vsub.f32 %v987, %v1904
        %1906 = vmatpush.msra.mxu0 %v1905
        %v1907 = vand.u32 %v979, 4294901760
        %v1908 = vsub.f32 %v979, %v1907
        %1909 = vmatpush.msra.mxu0 %v1908
        %v1910 = vand.u32 %v971, 4294901760
        %v1911 = vsub.f32 %v971, %v1910
        %1912 = vmatpush.msra.mxu0 %v1911
        %v1913 = vand.u32 %v1001, 4294901760
        %v1914 = vsub.f32 %v1001, %v1913
        %1915 = vmatmul.f32.gmra.mxu0 %v1914
        %v1916 = vpop.f32.mrf.mxu0
        %v1917 = vadd.f32 %v1885, %v1916
        %1918 = vdwg.mxu0
        %1919 = vmatpush.msra.mxu0 0.0
        %1920 = vmatpush.msra.mxu0 0.0
        %1921 = vmatpush.msra.mxu0 0.0
        %1922 = vmatpush.msra.mxu0 0.0
        %1923 = vmatpush.msra.mxu0 0.0
        %1924 = vmatpush.msra.mxu0 0.0
        %1925 = vmatpush.msra.mxu0 0.0
        %1926 = vmatpush.msra.mxu0 0.0
        %1927 = vmatpush.msra.mxu0 0.0
        %1928 = vmatpush.msra.mxu0 0.0
        %1929 = vmatpush.msra.mxu0 0.0
        %v1930 = vand.u32 %v1011, 4294901760
        %1931 = vmatpush.msra.mxu0 %v1930
        %v1932 = vand.u32 %v995, 4294901760
        %1933 = vmatpush.msra.mxu0 %v1932
        %v1934 = vand.u32 %v987, 4294901760
        %1935 = vmatpush.msra.mxu0 %v1934
        %v1936 = vand.u32 %v979, 4294901760
        %1937 = vmatpush.msra.mxu0 %v1936
        %v1938 = vand.u32 %v971, 4294901760
        %1939 = vmatpush.msra.mxu0 %v1938
        %v1940 = vand.u32 %v1001, 4294901760
        %v1941 = vsub.f32 %v1001, %v1940
        %v1942 = vand.u32 %v1941, 4294901760
        %1943 = vmatmul.f32.gmra.mxu0 %v1942
        %v1944 = vpop.f32.mrf.mxu0
        %v1945 = vadd.f32 %v1917, %v1944
        %1946 = vdwg.mxu0
        %1947 = vmatpush.msra.mxu0 0.0
        %1948 = vmatpush.msra.mxu0 0.0
        %1949 = vmatpush.msra.mxu0 0.0
        %1950 = vmatpush.msra.mxu0 0.0
        %1951 = vmatpush.msra.mxu0 0.0
        %1952 = vmatpush.msra.mxu0 0.0
        %1953 = vmatpush.msra.mxu0 0.0
        %1954 = vmatpush.msra.mxu0 0.0
        %1955 = vmatpush.msra.mxu0 0.0
        %1956 = vmatpush.msra.mxu0 0.0
        %1957 = vmatpush.msra.mxu0 0.0
        %v1958 = vand.u32 %v1011, 4294901760
        %v1959 = vsub.f32 %v1011, %v1958
        %v1960 = vand.u32 %v1959, 4294901760
        %1961 = vmatpush.msra.mxu0 %v1960
        %v1962 = vand.u32 %v995, 4294901760
        %v1963 = vsub.f32 %v995, %v1962
        %v1964 = vand.u32 %v1963, 4294901760
        %1965 = vmatpush.msra.mxu0 %v1964
        %v1966 = vand.u32 %v987, 4294901760
        %v1967 = vsub.f32 %v987, %v1966
        %v1968 = vand.u32 %v1967, 4294901760
        %1969 = vmatpush.msra.mxu0 %v1968
        %v1970 = vand.u32 %v979, 4294901760
        %v1971 = vsub.f32 %v979, %v1970
        %v1972 = vand.u32 %v1971, 4294901760
        %1973 = vmatpush.msra.mxu0 %v1972
        %v1974 = vand.u32 %v971, 4294901760
        %v1975 = vsub.f32 %v971, %v1974
        %v1976 = vand.u32 %v1975, 4294901760
        %1977 = vmatpush.msra.mxu0 %v1976
        %v1978 = vand.u32 %v1001, 4294901760
        %1979 = vmatmul.f32.gmra.mxu0 %v1978
        %v1980 = vpop.f32.mrf.mxu0
        %v1981 = vadd.f32 %v1945, %v1980
        %1982 = vdwg.mxu0
        %1983 = vmatpush.msra.mxu0 0.0
        %1984 = vmatpush.msra.mxu0 0.0
        %1985 = vmatpush.msra.mxu0 0.0
        %1986 = vmatpush.msra.mxu0 0.0
        %1987 = vmatpush.msra.mxu0 0.0
        %1988 = vmatpush.msra.mxu0 0.0
        %1989 = vmatpush.msra.mxu0 0.0
        %1990 = vmatpush.msra.mxu0 0.0
        %1991 = vmatpush.msra.mxu0 0.0
        %1992 = vmatpush.msra.mxu0 0.0
        %1993 = vmatpush.msra.mxu0 0.0
        %v1994 = vand.u32 %v1011, 4294901760
        %1995 = vmatpush.msra.mxu0 %v1994
        %v1996 = vand.u32 %v995, 4294901760
        %1997 = vmatpush.msra.mxu0 %v1996
        %v1998 = vand.u32 %v987, 4294901760
        %1999 = vmatpush.msra.mxu0 %v1998
        %v2000 = vand.u32 %v979, 4294901760
        %2001 = vmatpush.msra.mxu0 %v2000
        %v2002 = vand.u32 %v971, 4294901760
        %2003 = vmatpush.msra.mxu0 %v2002
        %v2004 = vand.u32 %v1001, 4294901760
        %2005 = vmatmul.f32.gmra.mxu0 %v2004
        %v2006 = vpop.f32.mrf.mxu0
        %v2007 = vadd.f32 %v1981, %v2006
        %2008 = vdwg.mxu0
        %2009 = vmatpush.msra.mxu0 0.0
        %2010 = vmatpush.msra.mxu0 0.0
        %2011 = vmatpush.msra.mxu0 0.0
        %2012 = vmatpush.msra.mxu0 0.0
        %2013 = vmatpush.msra.mxu0 0.0
        %2014 = vmatpush.msra.mxu0 0.0
        %2015 = vmatpush.msra.mxu0 0.0
        %2016 = vmatpush.msra.mxu0 0.0
        %2017 = vmatpush.msra.mxu0 0.0
        %2018 = vmatpush.msra.mxu0 0.0
        %2019 = vmatpush.msra.mxu0 0.0
        %v2020 = vand.u32 %v1013, 4294901760
        %2021 = vmatpush.msra.mxu0 %v2020
        %v2022 = vand.u32 %v996, 4294901760
        %2023 = vmatpush.msra.mxu0 %v2022
        %v2024 = vand.u32 %v988, 4294901760
        %2025 = vmatpush.msra.mxu0 %v2024
        %v2026 = vand.u32 %v980, 4294901760
        %2027 = vmatpush.msra.mxu0 %v2026
        %v2028 = vand.u32 %v972, 4294901760
        %2029 = vmatpush.msra.mxu0 %v2028
        %v2030 = vand.u32 %v1001, 4294901760
        %v2031 = vsub.f32 %v1001, %v2030
        %v2032 = vand.u32 %v2031, 4294901760
        %v2033 = vsub.f32 %v2031, %v2032
        %v2034 = vand.u32 %v2033, 4294901760
        %2035 = vmatmul.f32.gmra.mxu0 %v2034
        %v2036 = vpop.f32.mrf.mxu0
        %v2037 = vadd.f32 0.0, %v2036
        %2038 = vdwg.mxu0
        %2039 = vmatpush.msra.mxu0 0.0
        %2040 = vmatpush.msra.mxu0 0.0
        %2041 = vmatpush.msra.mxu0 0.0
        %2042 = vmatpush.msra.mxu0 0.0
        %2043 = vmatpush.msra.mxu0 0.0
        %2044 = vmatpush.msra.mxu0 0.0
        %2045 = vmatpush.msra.mxu0 0.0
        %2046 = vmatpush.msra.mxu0 0.0
        %2047 = vmatpush.msra.mxu0 0.0
        %2048 = vmatpush.msra.mxu0 0.0
        %2049 = vmatpush.msra.mxu0 0.0
        %v2050 = vand.u32 %v1013, 4294901760
        %v2051 = vsub.f32 %v1013, %v2050
        %v2052 = vand.u32 %v2051, 4294901760
        %v2053 = vsub.f32 %v2051, %v2052
        %v2054 = vand.u32 %v2053, 4294901760
        %2055 = vmatpush.msra.mxu0 %v2054
        %v2056 = vand.u32 %v996, 4294901760
        %v2057 = vsub.f32 %v996, %v2056
        %v2058 = vand.u32 %v2057, 4294901760
        %v2059 = vsub.f32 %v2057, %v2058
        %v2060 = vand.u32 %v2059, 4294901760
        %2061 = vmatpush.msra.mxu0 %v2060
        %v2062 = vand.u32 %v988, 4294901760
        %v2063 = vsub.f32 %v988, %v2062
        %v2064 = vand.u32 %v2063, 4294901760
        %v2065 = vsub.f32 %v2063, %v2064
        %v2066 = vand.u32 %v2065, 4294901760
        %2067 = vmatpush.msra.mxu0 %v2066
        %v2068 = vand.u32 %v980, 4294901760
        %v2069 = vsub.f32 %v980, %v2068
        %v2070 = vand.u32 %v2069, 4294901760
        %v2071 = vsub.f32 %v2069, %v2070
        %v2072 = vand.u32 %v2071, 4294901760
        %2073 = vmatpush.msra.mxu0 %v2072
        %v2074 = vand.u32 %v972, 4294901760
        %v2075 = vsub.f32 %v972, %v2074
        %v2076 = vand.u32 %v2075, 4294901760
        %v2077 = vsub.f32 %v2075, %v2076
        %v2078 = vand.u32 %v2077, 4294901760
        %2079 = vmatpush.msra.mxu0 %v2078
        %v2080 = vand.u32 %v1001, 4294901760
        %2081 = vmatmul.f32.gmra.mxu0 %v2080
        %v2082 = vpop.f32.mrf.mxu0
        %v2083 = vadd.f32 %v2037, %v2082
        %2084 = vdwg.mxu0
        %2085 = vmatpush.msra.mxu0 0.0
        %2086 = vmatpush.msra.mxu0 0.0
        %2087 = vmatpush.msra.mxu0 0.0
        %2088 = vmatpush.msra.mxu0 0.0
        %2089 = vmatpush.msra.mxu0 0.0
        %2090 = vmatpush.msra.mxu0 0.0
        %2091 = vmatpush.msra.mxu0 0.0
        %2092 = vmatpush.msra.mxu0 0.0
        %2093 = vmatpush.msra.mxu0 0.0
        %2094 = vmatpush.msra.mxu0 0.0
        %2095 = vmatpush.msra.mxu0 0.0
        %v2096 = vand.u32 %v1013, 4294901760
        %v2097 = vsub.f32 %v1013, %v2096
        %2098 = vmatpush.msra.mxu0 %v2097
        %v2099 = vand.u32 %v996, 4294901760
        %v2100 = vsub.f32 %v996, %v2099
        %2101 = vmatpush.msra.mxu0 %v2100
        %v2102 = vand.u32 %v988, 4294901760
        %v2103 = vsub.f32 %v988, %v2102
        %2104 = vmatpush.msra.mxu0 %v2103
        %v2105 = vand.u32 %v980, 4294901760
        %v2106 = vsub.f32 %v980, %v2105
        %2107 = vmatpush.msra.mxu0 %v2106
        %v2108 = vand.u32 %v972, 4294901760
        %v2109 = vsub.f32 %v972, %v2108
        %2110 = vmatpush.msra.mxu0 %v2109
        %v2111 = vand.u32 %v1001, 4294901760
        %v2112 = vsub.f32 %v1001, %v2111
        %2113 = vmatmul.f32.gmra.mxu0 %v2112
        %v2114 = vpop.f32.mrf.mxu0
        %v2115 = vadd.f32 %v2083, %v2114
        %2116 = vdwg.mxu0
        %2117 = vmatpush.msra.mxu0 0.0
        %2118 = vmatpush.msra.mxu0 0.0
        %2119 = vmatpush.msra.mxu0 0.0
        %2120 = vmatpush.msra.mxu0 0.0
        %2121 = vmatpush.msra.mxu0 0.0
        %2122 = vmatpush.msra.mxu0 0.0
        %2123 = vmatpush.msra.mxu0 0.0
        %2124 = vmatpush.msra.mxu0 0.0
        %2125 = vmatpush.msra.mxu0 0.0
        %2126 = vmatpush.msra.mxu0 0.0
        %2127 = vmatpush.msra.mxu0 0.0
        %v2128 = vand.u32 %v1013, 4294901760
        %2129 = vmatpush.msra.mxu0 %v2128
        %v2130 = vand.u32 %v996, 4294901760
        %2131 = vmatpush.msra.mxu0 %v2130
        %v2132 = vand.u32 %v988, 4294901760
        %2133 = vmatpush.msra.mxu0 %v2132
        %v2134 = vand.u32 %v980, 4294901760
        %2135 = vmatpush.msra.mxu0 %v2134
        %v2136 = vand.u32 %v972, 4294901760
        %2137 = vmatpush.msra.mxu0 %v2136
        %v2138 = vand.u32 %v1001, 4294901760
        %v2139 = vsub.f32 %v1001, %v2138
        %v2140 = vand.u32 %v2139, 4294901760
        %2141 = vmatmul.f32.gmra.mxu0 %v2140
        %v2142 = vpop.f32.mrf.mxu0
        %v2143 = vadd.f32 %v2115, %v2142
        %2144 = vdwg.mxu0
        %2145 = vmatpush.msra.mxu0 0.0
        %2146 = vmatpush.msra.mxu0 0.0
        %2147 = vmatpush.msra.mxu0 0.0
        %2148 = vmatpush.msra.mxu0 0.0
        %2149 = vmatpush.msra.mxu0 0.0
        %2150 = vmatpush.msra.mxu0 0.0
        %2151 = vmatpush.msra.mxu0 0.0
        %2152 = vmatpush.msra.mxu0 0.0
        %2153 = vmatpush.msra.mxu0 0.0
        %2154 = vmatpush.msra.mxu0 0.0
        %2155 = vmatpush.msra.mxu0 0.0
        %v2156 = vand.u32 %v1013, 4294901760
        %v2157 = vsub.f32 %v1013, %v2156
        %v2158 = vand.u32 %v2157, 4294901760
        %2159 = vmatpush.msra.mxu0 %v2158
        %v2160 = vand.u32 %v996, 4294901760
        %v2161 = vsub.f32 %v996, %v2160
        %v2162 = vand.u32 %v2161, 4294901760
        %2163 = vmatpush.msra.mxu0 %v2162
        %v2164 = vand.u32 %v988, 4294901760
        %v2165 = vsub.f32 %v988, %v2164
        %v2166 = vand.u32 %v2165, 4294901760
        %2167 = vmatpush.msra.mxu0 %v2166
        %v2168 = vand.u32 %v980, 4294901760
        %v2169 = vsub.f32 %v980, %v2168
        %v2170 = vand.u32 %v2169, 4294901760
        %2171 = vmatpush.msra.mxu0 %v2170
        %v2172 = vand.u32 %v972, 4294901760
        %v2173 = vsub.f32 %v972, %v2172
        %v2174 = vand.u32 %v2173, 4294901760
        %2175 = vmatpush.msra.mxu0 %v2174
        %v2176 = vand.u32 %v1001, 4294901760
        %2177 = vmatmul.f32.gmra.mxu0 %v2176
        %v2178 = vpop.f32.mrf.mxu0
        %v2179 = vadd.f32 %v2143, %v2178
        %2180 = vdwg.mxu0
        %2181 = vmatpush.msra.mxu0 0.0
        %2182 = vmatpush.msra.mxu0 0.0
        %2183 = vmatpush.msra.mxu0 0.0
        %2184 = vmatpush.msra.mxu0 0.0
        %2185 = vmatpush.msra.mxu0 0.0
        %2186 = vmatpush.msra.mxu0 0.0
        %2187 = vmatpush.msra.mxu0 0.0
        %2188 = vmatpush.msra.mxu0 0.0
        %2189 = vmatpush.msra.mxu0 0.0
        %2190 = vmatpush.msra.mxu0 0.0
        %2191 = vmatpush.msra.mxu0 0.0
        %v2192 = vand.u32 %v1013, 4294901760
        %2193 = vmatpush.msra.mxu0 %v2192
        %v2194 = vand.u32 %v996, 4294901760
        %2195 = vmatpush.msra.mxu0 %v2194
        %v2196 = vand.u32 %v988, 4294901760
        %2197 = vmatpush.msra.mxu0 %v2196
        %v2198 = vand.u32 %v980, 4294901760
        %2199 = vmatpush.msra.mxu0 %v2198
        %v2200 = vand.u32 %v972, 4294901760
        %2201 = vmatpush.msra.mxu0 %v2200
        %v2202 = vand.u32 %v1001, 4294901760
        %2203 = vmatmul.f32.gmra.mxu0 %v2202
        %v2204 = vpop.f32.mrf.mxu0
        %v2205 = vadd.f32 %v2179, %v2204
        %2206 = vdwg.mxu0
        %2207 = vmatpush.msra.mxu0 0.0
        %2208 = vmatpush.msra.mxu0 0.0
        %2209 = vmatpush.msra.mxu0 0.0
        %2210 = vmatpush.msra.mxu0 0.0
        %2211 = vmatpush.msra.mxu0 0.0
        %2212 = vmatpush.msra.mxu0 0.0
        %2213 = vmatpush.msra.mxu0 0.0
        %2214 = vmatpush.msra.mxu0 0.0
        %2215 = vmatpush.msra.mxu0 0.0
        %2216 = vmatpush.msra.mxu0 0.0
        %2217 = vmatpush.msra.mxu0 0.0
        %v2218 = vand.u32 %v1015, 4294901760
        %2219 = vmatpush.msra.mxu0 %v2218
        %v2220 = vand.u32 %v997, 4294901760
        %2221 = vmatpush.msra.mxu0 %v2220
        %v2222 = vand.u32 %v989, 4294901760
        %2223 = vmatpush.msra.mxu0 %v2222
        %v2224 = vand.u32 %v981, 4294901760
        %2225 = vmatpush.msra.mxu0 %v2224
        %v2226 = vand.u32 %v973, 4294901760
        %2227 = vmatpush.msra.mxu0 %v2226
        %v2228 = vand.u32 %v1001, 4294901760
        %v2229 = vsub.f32 %v1001, %v2228
        %v2230 = vand.u32 %v2229, 4294901760
        %v2231 = vsub.f32 %v2229, %v2230
        %v2232 = vand.u32 %v2231, 4294901760
        %2233 = vmatmul.f32.gmra.mxu0 %v2232
        %v2234 = vpop.f32.mrf.mxu0
        %v2235 = vadd.f32 0.0, %v2234
        %2236 = vdwg.mxu0
        %2237 = vmatpush.msra.mxu0 0.0
        %2238 = vmatpush.msra.mxu0 0.0
        %2239 = vmatpush.msra.mxu0 0.0
        %2240 = vmatpush.msra.mxu0 0.0
        %2241 = vmatpush.msra.mxu0 0.0
        %2242 = vmatpush.msra.mxu0 0.0
        %2243 = vmatpush.msra.mxu0 0.0
        %2244 = vmatpush.msra.mxu0 0.0
        %2245 = vmatpush.msra.mxu0 0.0
        %2246 = vmatpush.msra.mxu0 0.0
        %2247 = vmatpush.msra.mxu0 0.0
        %v2248 = vand.u32 %v1015, 4294901760
        %v2249 = vsub.f32 %v1015, %v2248
        %v2250 = vand.u32 %v2249, 4294901760
        %v2251 = vsub.f32 %v2249, %v2250
        %v2252 = vand.u32 %v2251, 4294901760
        %2253 = vmatpush.msra.mxu0 %v2252
        %v2254 = vand.u32 %v997, 4294901760
        %v2255 = vsub.f32 %v997, %v2254
        %v2256 = vand.u32 %v2255, 4294901760
        %v2257 = vsub.f32 %v2255, %v2256
        %v2258 = vand.u32 %v2257, 4294901760
        %2259 = vmatpush.msra.mxu0 %v2258
        %v2260 = vand.u32 %v989, 4294901760
        %v2261 = vsub.f32 %v989, %v2260
        %v2262 = vand.u32 %v2261, 4294901760
        %v2263 = vsub.f32 %v2261, %v2262
        %v2264 = vand.u32 %v2263, 4294901760
        %2265 = vmatpush.msra.mxu0 %v2264
        %v2266 = vand.u32 %v981, 4294901760
        %v2267 = vsub.f32 %v981, %v2266
        %v2268 = vand.u32 %v2267, 4294901760
        %v2269 = vsub.f32 %v2267, %v2268
        %v2270 = vand.u32 %v2269, 4294901760
        %2271 = vmatpush.msra.mxu0 %v2270
        %v2272 = vand.u32 %v973, 4294901760
        %v2273 = vsub.f32 %v973, %v2272
        %v2274 = vand.u32 %v2273, 4294901760
        %v2275 = vsub.f32 %v2273, %v2274
        %v2276 = vand.u32 %v2275, 4294901760
        %2277 = vmatpush.msra.mxu0 %v2276
        %v2278 = vand.u32 %v1001, 4294901760
        %2279 = vmatmul.f32.gmra.mxu0 %v2278
        %v2280 = vpop.f32.mrf.mxu0
        %v2281 = vadd.f32 %v2235, %v2280
        %2282 = vdwg.mxu0
        %2283 = vmatpush.msra.mxu0 0.0
        %2284 = vmatpush.msra.mxu0 0.0
        %2285 = vmatpush.msra.mxu0 0.0
        %2286 = vmatpush.msra.mxu0 0.0
        %2287 = vmatpush.msra.mxu0 0.0
        %2288 = vmatpush.msra.mxu0 0.0
        %2289 = vmatpush.msra.mxu0 0.0
        %2290 = vmatpush.msra.mxu0 0.0
        %2291 = vmatpush.msra.mxu0 0.0
        %2292 = vmatpush.msra.mxu0 0.0
        %2293 = vmatpush.msra.mxu0 0.0
        %v2294 = vand.u32 %v1015, 4294901760
        %v2295 = vsub.f32 %v1015, %v2294
        %2296 = vmatpush.msra.mxu0 %v2295
        %v2297 = vand.u32 %v997, 4294901760
        %v2298 = vsub.f32 %v997, %v2297
        %2299 = vmatpush.msra.mxu0 %v2298
        %v2300 = vand.u32 %v989, 4294901760
        %v2301 = vsub.f32 %v989, %v2300
        %2302 = vmatpush.msra.mxu0 %v2301
        %v2303 = vand.u32 %v981, 4294901760
        %v2304 = vsub.f32 %v981, %v2303
        %2305 = vmatpush.msra.mxu0 %v2304
        %v2306 = vand.u32 %v973, 4294901760
        %v2307 = vsub.f32 %v973, %v2306
        %2308 = vmatpush.msra.mxu0 %v2307
        %v2309 = vand.u32 %v1001, 4294901760
        %v2310 = vsub.f32 %v1001, %v2309
        %2311 = vmatmul.f32.gmra.mxu0 %v2310
        %v2312 = vpop.f32.mrf.mxu0
        %v2313 = vadd.f32 %v2281, %v2312
        %2314 = vdwg.mxu0
        %2315 = vmatpush.msra.mxu0 0.0
        %2316 = vmatpush.msra.mxu0 0.0
        %2317 = vmatpush.msra.mxu0 0.0
        %2318 = vmatpush.msra.mxu0 0.0
        %2319 = vmatpush.msra.mxu0 0.0
        %2320 = vmatpush.msra.mxu0 0.0
        %2321 = vmatpush.msra.mxu0 0.0
        %2322 = vmatpush.msra.mxu0 0.0
        %2323 = vmatpush.msra.mxu0 0.0
        %2324 = vmatpush.msra.mxu0 0.0
        %2325 = vmatpush.msra.mxu0 0.0
        %v2326 = vand.u32 %v1015, 4294901760
        %2327 = vmatpush.msra.mxu0 %v2326
        %v2328 = vand.u32 %v997, 4294901760
        %2329 = vmatpush.msra.mxu0 %v2328
        %v2330 = vand.u32 %v989, 4294901760
        %2331 = vmatpush.msra.mxu0 %v2330
        %v2332 = vand.u32 %v981, 4294901760
        %2333 = vmatpush.msra.mxu0 %v2332
        %v2334 = vand.u32 %v973, 4294901760
        %2335 = vmatpush.msra.mxu0 %v2334
        %v2336 = vand.u32 %v1001, 4294901760
        %v2337 = vsub.f32 %v1001, %v2336
        %v2338 = vand.u32 %v2337, 4294901760
        %2339 = vmatmul.f32.gmra.mxu0 %v2338
        %v2340 = vpop.f32.mrf.mxu0
        %v2341 = vadd.f32 %v2313, %v2340
        %2342 = vdwg.mxu0
        %2343 = vmatpush.msra.mxu0 0.0
        %2344 = vmatpush.msra.mxu0 0.0
        %2345 = vmatpush.msra.mxu0 0.0
        %2346 = vmatpush.msra.mxu0 0.0
        %2347 = vmatpush.msra.mxu0 0.0
        %2348 = vmatpush.msra.mxu0 0.0
        %2349 = vmatpush.msra.mxu0 0.0
        %2350 = vmatpush.msra.mxu0 0.0
        %2351 = vmatpush.msra.mxu0 0.0
        %2352 = vmatpush.msra.mxu0 0.0
        %2353 = vmatpush.msra.mxu0 0.0
        %v2354 = vand.u32 %v1015, 4294901760
        %v2355 = vsub.f32 %v1015, %v2354
        %v2356 = vand.u32 %v2355, 4294901760
        %2357 = vmatpush.msra.mxu0 %v2356
        %v2358 = vand.u32 %v997, 4294901760
        %v2359 = vsub.f32 %v997, %v2358
        %v2360 = vand.u32 %v2359, 4294901760
        %2361 = vmatpush.msra.mxu0 %v2360
        %v2362 = vand.u32 %v989, 4294901760
        %v2363 = vsub.f32 %v989, %v2362
        %v2364 = vand.u32 %v2363, 4294901760
        %2365 = vmatpush.msra.mxu0 %v2364
        %v2366 = vand.u32 %v981, 4294901760
        %v2367 = vsub.f32 %v981, %v2366
        %v2368 = vand.u32 %v2367, 4294901760
        %2369 = vmatpush.msra.mxu0 %v2368
        %v2370 = vand.u32 %v973, 4294901760
        %v2371 = vsub.f32 %v973, %v2370
        %v2372 = vand.u32 %v2371, 4294901760
        %2373 = vmatpush.msra.mxu0 %v2372
        %v2374 = vand.u32 %v1001, 4294901760
        %2375 = vmatmul.f32.gmra.mxu0 %v2374
        %v2376 = vpop.f32.mrf.mxu0
        %v2377 = vadd.f32 %v2341, %v2376
        %2378 = vdwg.mxu0
        %2379 = vmatpush.msra.mxu0 0.0
        %2380 = vmatpush.msra.mxu0 0.0
        %2381 = vmatpush.msra.mxu0 0.0
        %2382 = vmatpush.msra.mxu0 0.0
        %2383 = vmatpush.msra.mxu0 0.0
        %2384 = vmatpush.msra.mxu0 0.0
        %2385 = vmatpush.msra.mxu0 0.0
        %2386 = vmatpush.msra.mxu0 0.0
        %2387 = vmatpush.msra.mxu0 0.0
        %2388 = vmatpush.msra.mxu0 0.0
        %2389 = vmatpush.msra.mxu0 0.0
        %v2390 = vand.u32 %v1015, 4294901760
        %2391 = vmatpush.msra.mxu0 %v2390
        %v2392 = vand.u32 %v997, 4294901760
        %2393 = vmatpush.msra.mxu0 %v2392
        %v2394 = vand.u32 %v989, 4294901760
        %2395 = vmatpush.msra.mxu0 %v2394
        %v2396 = vand.u32 %v981, 4294901760
        %2397 = vmatpush.msra.mxu0 %v2396
        %v2398 = vand.u32 %v973, 4294901760
        %2399 = vmatpush.msra.mxu0 %v2398
        %v2400 = vand.u32 %v1001, 4294901760
        %2401 = vmatmul.f32.gmra.mxu0 %v2400
        %v2402 = vpop.f32.mrf.mxu0
        %v2403 = vadd.f32 %v2377, %v2402
        %2404 = vdwg.mxu0
        %2405 = vmatpush.msra.mxu0 0.0
        %2406 = vmatpush.msra.mxu0 0.0
        %2407 = vmatpush.msra.mxu0 0.0
        %2408 = vmatpush.msra.mxu0 0.0
        %2409 = vmatpush.msra.mxu0 0.0
        %2410 = vmatpush.msra.mxu0 0.0
        %2411 = vmatpush.msra.mxu0 0.0
        %2412 = vmatpush.msra.mxu0 0.0
        %2413 = vmatpush.msra.mxu0 0.0
        %2414 = vmatpush.msra.mxu0 0.0
        %2415 = vmatpush.msra.mxu0 0.0
        %v2416 = vand.u32 %v1017, 4294901760
        %2417 = vmatpush.msra.mxu0 %v2416
        %v2418 = vand.u32 %v998, 4294901760
        %2419 = vmatpush.msra.mxu0 %v2418
        %v2420 = vand.u32 %v990, 4294901760
        %2421 = vmatpush.msra.mxu0 %v2420
        %v2422 = vand.u32 %v982, 4294901760
        %2423 = vmatpush.msra.mxu0 %v2422
        %v2424 = vand.u32 %v974, 4294901760
        %2425 = vmatpush.msra.mxu0 %v2424
        %v2426 = vand.u32 %v1001, 4294901760
        %v2427 = vsub.f32 %v1001, %v2426
        %v2428 = vand.u32 %v2427, 4294901760
        %v2429 = vsub.f32 %v2427, %v2428
        %v2430 = vand.u32 %v2429, 4294901760
        %2431 = vmatmul.f32.gmra.mxu0 %v2430
        %v2432 = vpop.f32.mrf.mxu0
        %v2433 = vadd.f32 0.0, %v2432
        %2434 = vdwg.mxu0
        %2435 = vmatpush.msra.mxu0 0.0
        %2436 = vmatpush.msra.mxu0 0.0
        %2437 = vmatpush.msra.mxu0 0.0
        %2438 = vmatpush.msra.mxu0 0.0
        %2439 = vmatpush.msra.mxu0 0.0
        %2440 = vmatpush.msra.mxu0 0.0
        %2441 = vmatpush.msra.mxu0 0.0
        %2442 = vmatpush.msra.mxu0 0.0
        %2443 = vmatpush.msra.mxu0 0.0
        %2444 = vmatpush.msra.mxu0 0.0
        %2445 = vmatpush.msra.mxu0 0.0
        %v2446 = vand.u32 %v1017, 4294901760
        %v2447 = vsub.f32 %v1017, %v2446
        %v2448 = vand.u32 %v2447, 4294901760
        %v2449 = vsub.f32 %v2447, %v2448
        %v2450 = vand.u32 %v2449, 4294901760
        %2451 = vmatpush.msra.mxu0 %v2450
        %v2452 = vand.u32 %v998, 4294901760
        %v2453 = vsub.f32 %v998, %v2452
        %v2454 = vand.u32 %v2453, 4294901760
        %v2455 = vsub.f32 %v2453, %v2454
        %v2456 = vand.u32 %v2455, 4294901760
        %2457 = vmatpush.msra.mxu0 %v2456
        %v2458 = vand.u32 %v990, 4294901760
        %v2459 = vsub.f32 %v990, %v2458
        %v2460 = vand.u32 %v2459, 4294901760
        %v2461 = vsub.f32 %v2459, %v2460
        %v2462 = vand.u32 %v2461, 4294901760
        %2463 = vmatpush.msra.mxu0 %v2462
        %v2464 = vand.u32 %v982, 4294901760
        %v2465 = vsub.f32 %v982, %v2464
        %v2466 = vand.u32 %v2465, 4294901760
        %v2467 = vsub.f32 %v2465, %v2466
        %v2468 = vand.u32 %v2467, 4294901760
        %2469 = vmatpush.msra.mxu0 %v2468
        %v2470 = vand.u32 %v974, 4294901760
        %v2471 = vsub.f32 %v974, %v2470
        %v2472 = vand.u32 %v2471, 4294901760
        %v2473 = vsub.f32 %v2471, %v2472
        %v2474 = vand.u32 %v2473, 4294901760
        %2475 = vmatpush.msra.mxu0 %v2474
        %v2476 = vand.u32 %v1001, 4294901760
        %2477 = vmatmul.f32.gmra.mxu0 %v2476
        %v2478 = vpop.f32.mrf.mxu0
        %v2479 = vadd.f32 %v2433, %v2478
        %2480 = vdwg.mxu0
        %2481 = vmatpush.msra.mxu0 0.0
        %2482 = vmatpush.msra.mxu0 0.0
        %2483 = vmatpush.msra.mxu0 0.0
        %2484 = vmatpush.msra.mxu0 0.0
        %2485 = vmatpush.msra.mxu0 0.0
        %2486 = vmatpush.msra.mxu0 0.0
        %2487 = vmatpush.msra.mxu0 0.0
        %2488 = vmatpush.msra.mxu0 0.0
        %2489 = vmatpush.msra.mxu0 0.0
        %2490 = vmatpush.msra.mxu0 0.0
        %2491 = vmatpush.msra.mxu0 0.0
        %v2492 = vand.u32 %v1017, 4294901760
        %v2493 = vsub.f32 %v1017, %v2492
        %2494 = vmatpush.msra.mxu0 %v2493
        %v2495 = vand.u32 %v998, 4294901760
        %v2496 = vsub.f32 %v998, %v2495
        %2497 = vmatpush.msra.mxu0 %v2496
        %v2498 = vand.u32 %v990, 4294901760
        %v2499 = vsub.f32 %v990, %v2498
        %2500 = vmatpush.msra.mxu0 %v2499
        %v2501 = vand.u32 %v982, 4294901760
        %v2502 = vsub.f32 %v982, %v2501
        %2503 = vmatpush.msra.mxu0 %v2502
        %v2504 = vand.u32 %v974, 4294901760
        %v2505 = vsub.f32 %v974, %v2504
        %2506 = vmatpush.msra.mxu0 %v2505
        %v2507 = vand.u32 %v1001, 4294901760
        %v2508 = vsub.f32 %v1001, %v2507
        %2509 = vmatmul.f32.gmra.mxu0 %v2508
        %v2510 = vpop.f32.mrf.mxu0
        %v2511 = vadd.f32 %v2479, %v2510
        %2512 = vdwg.mxu0
        %2513 = vmatpush.msra.mxu0 0.0
        %2514 = vmatpush.msra.mxu0 0.0
        %2515 = vmatpush.msra.mxu0 0.0
        %2516 = vmatpush.msra.mxu0 0.0
        %2517 = vmatpush.msra.mxu0 0.0
        %2518 = vmatpush.msra.mxu0 0.0
        %2519 = vmatpush.msra.mxu0 0.0
        %2520 = vmatpush.msra.mxu0 0.0
        %2521 = vmatpush.msra.mxu0 0.0
        %2522 = vmatpush.msra.mxu0 0.0
        %2523 = vmatpush.msra.mxu0 0.0
        %v2524 = vand.u32 %v1017, 4294901760
        %2525 = vmatpush.msra.mxu0 %v2524
        %v2526 = vand.u32 %v998, 4294901760
        %2527 = vmatpush.msra.mxu0 %v2526
        %v2528 = vand.u32 %v990, 4294901760
        %2529 = vmatpush.msra.mxu0 %v2528
        %v2530 = vand.u32 %v982, 4294901760
        %2531 = vmatpush.msra.mxu0 %v2530
        %v2532 = vand.u32 %v974, 4294901760
        %2533 = vmatpush.msra.mxu0 %v2532
        %v2534 = vand.u32 %v1001, 4294901760
        %v2535 = vsub.f32 %v1001, %v2534
        %v2536 = vand.u32 %v2535, 4294901760
        %2537 = vmatmul.f32.gmra.mxu0 %v2536
        %v2538 = vpop.f32.mrf.mxu0
        %v2539 = vadd.f32 %v2511, %v2538
        %2540 = vdwg.mxu0
        %2541 = vmatpush.msra.mxu0 0.0
        %2542 = vmatpush.msra.mxu0 0.0
        %2543 = vmatpush.msra.mxu0 0.0
        %2544 = vmatpush.msra.mxu0 0.0
        %2545 = vmatpush.msra.mxu0 0.0
        %2546 = vmatpush.msra.mxu0 0.0
        %2547 = vmatpush.msra.mxu0 0.0
        %2548 = vmatpush.msra.mxu0 0.0
        %2549 = vmatpush.msra.mxu0 0.0
        %2550 = vmatpush.msra.mxu0 0.0
        %2551 = vmatpush.msra.mxu0 0.0
        %v2552 = vand.u32 %v1017, 4294901760
        %v2553 = vsub.f32 %v1017, %v2552
        %v2554 = vand.u32 %v2553, 4294901760
        %2555 = vmatpush.msra.mxu0 %v2554
        %v2556 = vand.u32 %v998, 4294901760
        %v2557 = vsub.f32 %v998, %v2556
        %v2558 = vand.u32 %v2557, 4294901760
        %2559 = vmatpush.msra.mxu0 %v2558
        %v2560 = vand.u32 %v990, 4294901760
        %v2561 = vsub.f32 %v990, %v2560
        %v2562 = vand.u32 %v2561, 4294901760
        %2563 = vmatpush.msra.mxu0 %v2562
        %v2564 = vand.u32 %v982, 4294901760
        %v2565 = vsub.f32 %v982, %v2564
        %v2566 = vand.u32 %v2565, 4294901760
        %2567 = vmatpush.msra.mxu0 %v2566
        %v2568 = vand.u32 %v974, 4294901760
        %v2569 = vsub.f32 %v974, %v2568
        %v2570 = vand.u32 %v2569, 4294901760
        %2571 = vmatpush.msra.mxu0 %v2570
        %v2572 = vand.u32 %v1001, 4294901760
        %2573 = vmatmul.f32.gmra.mxu0 %v2572
        %v2574 = vpop.f32.mrf.mxu0
        %v2575 = vadd.f32 %v2539, %v2574
        %2576 = vdwg.mxu0
        %2577 = vmatpush.msra.mxu0 0.0
        %2578 = vmatpush.msra.mxu0 0.0
        %2579 = vmatpush.msra.mxu0 0.0
        %2580 = vmatpush.msra.mxu0 0.0
        %2581 = vmatpush.msra.mxu0 0.0
        %2582 = vmatpush.msra.mxu0 0.0
        %2583 = vmatpush.msra.mxu0 0.0
        %2584 = vmatpush.msra.mxu0 0.0
        %2585 = vmatpush.msra.mxu0 0.0
        %2586 = vmatpush.msra.mxu0 0.0
        %2587 = vmatpush.msra.mxu0 0.0
        %v2588 = vand.u32 %v1017, 4294901760
        %2589 = vmatpush.msra.mxu0 %v2588
        %v2590 = vand.u32 %v998, 4294901760
        %2591 = vmatpush.msra.mxu0 %v2590
        %v2592 = vand.u32 %v990, 4294901760
        %2593 = vmatpush.msra.mxu0 %v2592
        %v2594 = vand.u32 %v982, 4294901760
        %2595 = vmatpush.msra.mxu0 %v2594
        %v2596 = vand.u32 %v974, 4294901760
        %2597 = vmatpush.msra.mxu0 %v2596
        %v2598 = vand.u32 %v1001, 4294901760
        %2599 = vmatmul.f32.gmra.mxu0 %v2598
        %v2600 = vpop.f32.mrf.mxu0
        %v2601 = vadd.f32 %v2575, %v2600
        %2602 = vdwg.mxu0
        %v2603 = vsel %vm502, %v1215, 0.0
        %v2604 = vsel %vm503, %v1413, 0.0
        %v2605 = vsel %vm504, %v1611, 0.0
        %v2606 = vsel %vm505, %v1809, 0.0
        %v2607 = vsel %vm506, %v2007, 0.0
        %v2608 = vsel %vm507, %v2205, 0.0
        %v2609 = vsel %vm508, %v2403, 0.0
        %v2610 = vsel %vm509, %v2601, 0.0
        %v2611 = vadd.f32 %v2603, %v2604
        %v2612 = vadd.f32 %v2611, %v2605
        %v2613 = vadd.f32 %v2612, %v2606
        %v2614 = vadd.f32 %v2613, %v2607
        %v2615 = vadd.f32 %v2614, %v2608
        %v2616 = vadd.f32 %v2615, %v2609
        %v2617 = vadd.f32 %v2616, %v2610
        %2618 = vadd.xlane.f32.xlu0 %v2617
        %v2619 = vpop.xlane.xlu0 %2618
        %v2620 = vmul.f32 %v2619, 0.0010405828
        %v2621 = vsub.f32 %v1215, %v2620
        %v2622 = vsub.f32 %v1413, %v2620
        %v2623 = vsub.f32 %v1611, %v2620
        %v2624 = vsub.f32 %v1809, %v2620
        %v2625 = vsub.f32 %v2007, %v2620
        %v2626 = vsub.f32 %v2205, %v2620
        %v2627 = vsub.f32 %v2403, %v2620
        %v2628 = vsub.f32 %v2601, %v2620
        %v2629 = vsel %vm502, %v2621, 0.0
        %v2630 = vsel %vm503, %v2622, 0.0
        %v2631 = vsel %vm504, %v2623, 0.0
        %v2632 = vsel %vm505, %v2624, 0.0
        %v2633 = vsel %vm506, %v2625, 0.0
        %v2634 = vsel %vm507, %v2626, 0.0
        %v2635 = vsel %vm508, %v2627, 0.0
        %v2636 = vsel %vm509, %v2628, 0.0
        %v2637 = vmul.f32 %v2629, %v2629
        %v2638 = vmul.f32 %v2630, %v2630
        %v2639 = vmul.f32 %v2631, %v2631
        %v2640 = vmul.f32 %v2632, %v2632
        %v2641 = vmul.f32 %v2633, %v2633
        %v2642 = vmul.f32 %v2634, %v2634
        %v2643 = vmul.f32 %v2635, %v2635
        %v2644 = vmul.f32 %v2636, %v2636
        %v2645 = vadd.f32 %v2637, %v2638
        %v2646 = vadd.f32 %v2645, %v2639
        %v2647 = vadd.f32 %v2646, %v2640
        %v2648 = vadd.f32 %v2647, %v2641
        %v2649 = vadd.f32 %v2648, %v2642
        %v2650 = vadd.f32 %v2649, %v2643
        %v2651 = vadd.f32 %v2650, %v2644
        %2652 = vadd.xlane.f32.xlu0 %v2651
        %v2653 = vpop.xlane.xlu0 %2652
        %v2654 = vmul.f32 %v2653, 0.0010405828
        %v2655 = vadd.f32 %v2654, 1e-05
        %v2656 = vrsqrt.pop %v2655
        %v2657 = vmul.f32 %v2656, %v2655
        %v2658 = vmul.f32 %v2657, %v2656
        %v2659 = vmul.f32 0.5, %v2658
        %v2660 = vsub.f32 1.5, %v2659
        %v2661 = vmul.f32 %v2656, %v2660
        %vm2662 = vweird.f32 %v2655
        %vm2663 = vweird.f32 %v2656
        %vm2664 = vmor %vm2662, %vm2663
        %v2665 = vsel %vm2664, %v2656, %v2661
        %v2666 = vsub.f32 0.0, %v2620
        %v2667 = vmul.f32 %v2666, %v2665
        %v2668 = vmul.f32 %v1215, %v2665
        %v2669 = vmul.f32 %v1413, %v2665
        %v2670 = vmul.f32 %v1611, %v2665
        %v2671 = vmul.f32 %v1809, %v2665
        %v2672 = vmul.f32 %v2007, %v2665
        %v2673 = vmul.f32 %v2205, %v2665
        %v2674 = vmul.f32 %v2403, %v2665
        %v2675 = vmul.f32 %v2601, %v2665
        %v2676 = vadd.f32 %v2668, %v2667
        %v2677 = vadd.f32 %v2669, %v2667
        %v2678 = vadd.f32 %v2670, %v2667
        %v2679 = vadd.f32 %v2671, %v2667
        %v2680 = vadd.f32 %v2672, %v2667
        %v2681 = vadd.f32 %v2673, %v2667
        %v2682 = vadd.f32 %v2674, %v2667
        %v2683 = vadd.f32 %v2675, %v2667
        %vm2684 = vcmp.ge.f32.partialorder %v2676, 0.0
        %vm2685 = vcmp.ge.f32.partialorder %v2677, 0.0
        %vm2686 = vcmp.ge.f32.partialorder %v2678, 0.0
        %vm2687 = vcmp.ge.f32.partialorder %v2679, 0.0
        %vm2688 = vcmp.ge.f32.partialorder %v2680, 0.0
        %vm2689 = vcmp.ge.f32.partialorder %v2681, 0.0
        %vm2690 = vcmp.ge.f32.partialorder %v2682, 0.0
        %vm2691 = vcmp.ge.f32.partialorder %v2683, 0.0
        %2693 = vset.pattern.permute.xlu0 0
        %2694 = vperm.xlu0 %2693, %v511
        %v2695 = vpop.permute.xlu0 %2694
        %v2697 = vmul.f32 %v2695, %v2676
        %v2698 = vmul.f32 %v2695, %v2677
        %v2699 = vmul.f32 %v2695, %v2678
        %v2700 = vmul.f32 %v2695, %v2679
        %v2701 = vmul.f32 %v2695, %v2680
        %v2702 = vmul.f32 %v2695, %v2681
        %v2703 = vmul.f32 %v2695, %v2682
        %v2704 = vmul.f32 %v2695, %v2683
        %v2705 = vsel %vm2684, %v2676, %v2697
        %v2706 = vsel %vm2685, %v2677, %v2698
        %v2707 = vsel %vm2686, %v2678, %v2699
        %v2708 = vsel %vm2687, %v2679, %v2700
        %v2709 = vsel %vm2688, %v2680, %v2701
        %v2710 = vsel %vm2689, %v2681, %v2702
        %v2711 = vsel %vm2690, %v2682, %v2703
        %v2712 = vsel %vm2691, %v2683, %v2704
        %2713 = vst [vmem:[%s188] sm:$0xff] %v2705
        %2714 = vst [vmem:[%s188 + $0x8] sm:$0xff] %v2706
        %2715 = vst [vmem:[%s188 + $0x10] sm:$0xff] %v2707
        %2716 = vst [vmem:[%s188 + $0x18] sm:$0xff] %v2708
        %2717 = vst [vmem:[%s188 + $0x20] sm:$0xff] %v2709
        %2718 = vst [vmem:[%s188 + $0x28] sm:$0xff] %v2710
        %2719 = vst [vmem:[%s188 + $0x30] sm:$0xff] %v2711
        %2720 = vst [vmem:[%s188 + $0x38] sm:$0xff] %v2712
        %s2721 = sand.u32 %s96, 1
        %s2722 = scalar_lea.sflag [#allocation4], %s2721
        %s2723 = sand.u32 %s96, 1
        %s2724 = smul.addr %s2723, 64
        %s2725 = scalar_lea.vmem [#allocation5], %s2724
        // Predicated region
        $region37: #{tpu_custom_call.1} parent=31 // pred_check
          %p2726 = pneg %p106
        $region38: #{tpu_custom_call.1} parent=31 // pred_check_branch
          %2728 = sbr.rel (%p2726) target = $region40
        $region39: #{tpu_custom_call.1} parent=31 // pred_region
          %2730 = vsyncadd %s2722, 0
          %s2731 = smul.addr %s20, 8
          %s2732 = smul.addr %s2731, 8
          %s2733 = scalar_lea.hbm %s3, %s2732
          %s2735 = sshll.u32 %s2725, 4
          %s2736 = int_to_ptr.vmem [resolvable:$true] %s2735
          %s2737 = sshll.u32 %s2733, 4
          %s2738 = int_to_ptr.hbm [resolvable:$true] %s2737
          %2740 = dma.vmem_to_hbm [thread:$0]  %s2736, 1024, %s2738, %s2722
        $region40: #{tpu_custom_call.1} parent=31 // pred_fallthru
          _
      $region32: #{tpu_custom_call.1} parent=5 // pred_fallthru
        _
      %p2741 = scmp.le.s32.totalorder 2, %s15
      // Predicated region
      $region41: #{tpu_custom_call.1} parent=5 // pred_check
        %p2742 = pneg %p2741
      $region42: #{tpu_custom_call.1} parent=5 // pred_check_branch
        %2744 = sbr.rel (%p2742) target = $region44
      $region43: #{tpu_custom_call.1} parent=5 // pred_region
        %s2745 = ssub.s32 %s15, 2
        // Predicated region
        $region45: #{tpu_custom_call.1} parent=43 // pred_check
          %p2746 = pneg %p112
        $region46: #{tpu_custom_call.1} parent=43 // pred_check_branch
          %2748 = sbr.rel (%p2746) target = $region48
        $region47: #{tpu_custom_call.1} parent=43 // pred_region
          %s2749 = sand.u32 %s97, 1
          %s2750 = scalar_lea.sflag [#allocation4], %s2749
          %s2751 = sand.u32 %s97, 1
          %s2752 = smul.addr %s2751, 64
          %s2753 = scalar_lea.vmem [#allocation5], %s2752
          %2755 = dma.done %s2750, 1024
        $region48: #{tpu_custom_call.1} parent=43 // pred_fallthru
          _
      $region44: #{tpu_custom_call.1} parent=5 // pred_fallthru
        _
    $region6: #{tpu_custom_call.1} parent=1 // loop_footer
      %s19 = sadd.s32 1, %s15
    $region7: #{tpu_custom_call.1} parent=1 // loop_footer_branch
      %14 = sbr.rel target = $region3
    $region8: #{tpu_custom_call.1} parent=1 // loop_exit
      _
    %2756 = vsyncpa [#allocation3], 1
    %s2757 = scalar_lea.sflag [#allocation3], 1
    %2758 = vsyncpa %s2757, 1
    %2759 = vsyncpa [#allocation4], 1
    %s2760 = scalar_lea.sflag [#allocation4], 1
    %2761 = vsyncpa %s2760, 1

</llo_original>
